<compile_context>
chip_gen: v5e
topology: v5e:2x2
jax: 0.10.0
libtpu: 0.0.40
codegen_flags: <defaults>
</compile_context>

<pallas_src>
import functools

import jax
import jax.numpy as jnp
from jax.experimental import pallas as pl
from jax.experimental.pallas import tpu as pltpu


def _round_up(x, m):
    return (x + m - 1) // m * m


def _pad2d(x, rows, cols):
    return jnp.pad(x, ((0, rows - x.shape[0]), (0, cols - x.shape[1])))


def _gcn_layer_kernel(a_ref, x_ref, w_ref, b_ref, o_ref, acc_ref, *, activate):
    """One (row-tile, k-tile) grid step of  H = act(A @ (X @ W) + b).

    Grid axis 0: destination-node row tiles ('parallel').
    Grid axis 1: source-node reduction tiles ('arbitrary', accumulated).
    """
    k = pl.program_id(1)

    @pl.when(k == 0)
    def _():
        acc_ref[...] = jnp.zeros_like(acc_ref)

    # Feature transform for this K-chunk of source nodes.  W is tiny, so
    # recomputing it per row tile is cheaper than an HBM/VMEM round trip for
    # the XW intermediate (no scratch store/load).
    xw = jnp.dot(x_ref[...], w_ref[...], preferred_element_type=jnp.float32)

    # Weighted-sum aggregation over this chunk of neighbors.
    # bf16 MXU inputs, f32 accumulation in VMEM scratch.
    acc_ref[...] += jnp.dot(
        a_ref[...], xw.astype(jnp.bfloat16), preferred_element_type=jnp.float32
    )

    @pl.when(k == pl.num_programs(1) - 1)
    def _():
        h = acc_ref[...] + b_ref[...]
        if activate:
            h = jnp.maximum(h, 0.0)  # ReLU
        o_ref[...] = h.astype(o_ref.dtype)


def graphconv_layer(adj_p, x_p, w_p, b_p, *, activate, tm, tk, out_dtype):
    """act(adj_p @ (x_p @ w_p) + b_p) with (tm, tk)-tiled adjacency matmul."""
    n_pad = adj_p.shape[0]
    f_in_p = x_p.shape[1]
    f_out_p = w_p.shape[1]
    assert adj_p.shape == (n_pad, n_pad)
    assert x_p.shape == (n_pad, f_in_p)
    assert w_p.shape == (f_in_p, f_out_p)
    assert b_p.shape == (1, f_out_p)
    assert n_pad % tm == 0 and n_pad % tk == 0
    assert tm % 8 == 0 and tk % 128 == 0
    assert f_in_p % 128 == 0 and f_out_p % 128 == 0

    grid = (n_pad // tm, n_pad // tk)

    # Deliberate VMEM budget: double-buffered blocks + f32 accumulator.
    vmem_bytes = (
        2 * tm * tk * adj_p.dtype.itemsize        # adjacency tiles (bf16)
        + 2 * tk * f_in_p * x_p.dtype.itemsize    # feature tiles
        + 2 * f_in_p * f_out_p * w_p.dtype.itemsize
        + 2 * 8 * f_out_p * 4                     # bias (sublane-padded)
        + 2 * tm * f_out_p * jnp.dtype(out_dtype).itemsize
        + tm * f_out_p * 4                        # accumulator scratch
    )
    vmem_limit = int(min(max(2 * vmem_bytes, 16 * 1024 * 1024), 48 * 1024 * 1024))

    kernel = functools.partial(_gcn_layer_kernel, activate=activate)
    return pl.pallas_call(
        kernel,
        out_shape=jax.ShapeDtypeStruct((n_pad, f_out_p), out_dtype),
        grid_spec=pltpu.PrefetchScalarGridSpec(
            num_scalar_prefetch=0,
            grid=grid,
            in_specs=[
                pl.BlockSpec((tm, tk), lambda i, k: (i, k)),           # adjacency
                pl.BlockSpec((tk, f_in_p), lambda i, k: (k, 0)),       # features
                pl.BlockSpec((f_in_p, f_out_p), lambda i, k: (0, 0)),  # weight
                pl.BlockSpec((1, f_out_p), lambda i, k: (0, 0)),       # bias
            ],
            out_specs=pl.BlockSpec((tm, f_out_p), lambda i, k: (i, 0)),
            scratch_shapes=[pltpu.VMEM((tm, f_out_p), jnp.float32)],
        ),
        compiler_params=pltpu.CompilerParams(
            dimension_semantics=("parallel", "arbitrary"),
            vmem_limit_bytes=vmem_limit,
        ),
    )(adj_p, x_p, w_p, b_p)


def init_gcn_params(key, in_feats, n_hidden, n_classes, n_layers):
    """Deterministic parameter init (glorot-ish weights, zero bias)."""
    dims = [in_feats] + [n_hidden] * n_layers + [n_classes]
    params = []
    for i in range(len(dims) - 1):
        key, sub = jax.random.split(key)
        fan_in, fan_out = dims[i], dims[i + 1]
        scale = jnp.sqrt(6.0 / (fan_in + fan_out))
        w = jax.random.uniform(
            sub, (fan_in, fan_out), jnp.float32, minval=-scale, maxval=scale
        )
        bb = jnp.zeros((fan_out,), jnp.float32)
        params.append((w, bb))
    return params


@functools.partial(jax.jit, static_argnames=("tile",))
def _gcn_forward_impl(features, adj_w, params, tile):
    n, f_in = features.shape

    # Tile size: multiple of 128, clipped to the padded node count.
    t = _round_up(min(tile, _round_up(n, 128)), 128)
    n_pad = _round_up(n, t)

    # Adjacency (the dominant HBM stream) stored in bf16.
    adj_p = _pad2d(adj_w, n_pad, n_pad).astype(jnp.bfloat16)

    # Activations as bf16 MXU inputs (accumulation stays f32 in-kernel).
    h = _pad2d(features, n_pad, _round_up(f_in, 128)).astype(jnp.bfloat16)

    n_layers = len(params)
    for i, (w, b) in enumerate(params):
        f_i, f_o = w.shape
        f_i_p, f_o_p = _round_up(f_i, 128), _round_up(f_o, 128)
        w_p = _pad2d(w, f_i_p, f_o_p).astype(jnp.bfloat16)
        b_p = jnp.pad(b, (0, f_o_p - f_o)).reshape(1, f_o_p).astype(jnp.float32)
        last = i == n_layers - 1
        # TODO(synk): dropout before layers i>0 is identity (inference mode).
        h = graphconv_layer(
            adj_p, h, w_p, b_p,
            activate=not last, tm=t, tk=t,
            out_dtype=jnp.float32 if last else jnp.bfloat16,
        )

    n_classes = params[-1][0].shape[1]
    return h[:n, :n_classes]


def gcn_forward(features, adj_w, params, *, tile=512):
    """GCN forward: hidden GraphConv layers use ReLU, final layer has none."""
    return _gcn_forward_impl(features, adj_w, params, tile)


def build_weighted_adjacency(n_nodes, src, dst, edge_weight):
    """Glue: dense weighted adjacency A_w[dst, src] = edge_weight."""
    # TODO(synk): for realistic sparsity, replace with a scalar-prefetch CSR
    # SpMM kernel instead of streaming the dense N x N adjacency.
    adj = jnp.zeros((n_nodes, n_nodes), jnp.float32)
    adj = adj.at[dst, src].add(edge_weight)
    return adj


if __name__ == "__main__":
    key = jax.random.PRNGKey(0)

    # Synthetic problem: 256 nodes, 16 input feats, 32 hidden, 8 classes,
    # n_layers=2 -> 3 GraphConv layers.  TILE=128 -> a 2x2 grid (exercises
    # both the parallel row axis and the K accumulation).
    N, IN_FEATS, N_HIDDEN, N_CLASSES, N_LAYERS = 256, 16, 32, 8, 2
    TILE = 128

    k_feat, k_edge, k_w, k_param = jax.random.split(key, 4)

    features = jax.random.normal(k_feat, (N, IN_FEATS), jnp.float32)

    # Ring + random extra edges (deterministic), with edge weights.
    n_extra = 512
    src_extra = jax.random.randint(k_edge, (n_extra,), 0, N)
    dst_extra = jax.random.randint(jax.random.fold_in(k_edge, 1), (n_extra,), 0, N)
    src = jnp.concatenate([jnp.arange(N), src_extra])
    dst = jnp.concatenate([(jnp.arange(N) + 1) % N, dst_extra])
    edge_weight = jax.random.uniform(k_w, (src.shape[0],), jnp.float32)

    adj_w = build_weighted_adjacency(N, src, dst, edge_weight)
    params = init_gcn_params(k_param, IN_FEATS, N_HIDDEN, N_CLASSES, N_LAYERS)

    out = jax.block_until_ready(gcn_forward(features, adj_w, params, tile=TILE))
    assert out.shape == (N, N_CLASSES), out.shape

    # Reference 1: pure-JAX mirror of the kernel math (bf16 MXU inputs,
    # f32 accumulation) -> tight tolerance.
    adj_bf = adj_w.astype(jnp.bfloat16)
    h_ref = features.astype(jnp.bfloat16)
    for i, (w, b) in enumerate(params):
        xw = jnp.dot(h_ref, w.astype(jnp.bfloat16),
                     preferred_element_type=jnp.float32)
        hh = jnp.dot(adj_bf, xw.astype(jnp.bfloat16),
                     preferred_element_type=jnp.float32) + b
        if i != len(params) - 1:
            h_ref = jnp.maximum(hh, 0.0).astype(jnp.bfloat16)
        else:
            h_ref = hh
    assert jnp.allclose(out, h_ref, atol=2e-3, rtol=2e-3), (
        float(jnp.max(jnp.abs(out - h_ref))))

    # Reference 2: exact f32 math, loose tolerance (bf16 inputs in the kernel).
    h_f32 = features
    for i, (w, b) in enumerate(params):
        h_f32 = adj_w @ (h_f32 @ w) + b
        if i != len(params) - 1:
            h_f32 = jnp.maximum(h_f32, 0.0)
    assert jnp.allclose(out, h_f32, atol=1.5e-1, rtol=1.5e-1), (
        float(jnp.max(jnp.abs(out - h_f32))))

    print("KERNEL_OK")
</pallas_src>

<mosaic_0001>
module attributes {stable_mosaic.version = 11 : i64} {
  func.func @_gcn_layer_kernel(%arg0: i32, %arg1: i32, %arg2: memref<128x128xbf16, #tpu.memory_space<vmem>>, %arg3: memref<128x128xbf16, #tpu.memory_space<vmem>>, %arg4: memref<128x128xbf16, #tpu.memory_space<vmem>>, %arg5: memref<1x128xf32, #tpu.memory_space<vmem>>, %arg6: memref<128x128xbf16, #tpu.memory_space<vmem>>, %arg7: memref<128x128xf32, #tpu.memory_space<vmem>>) attributes {dimension_semantics = [#tpu.dimension_semantics<parallel>, #tpu.dimension_semantics<arbitrary>], iteration_bounds = array<i64: 2, 2>, scalar_prefetch = 0 : i64, scratch_operands = 1 : i64, tpu.core_type = #tpu.core_type<tc>, window_params = [{transform_indices = @transform_0, window_bounds = array<i64: 128, 128>}, {transform_indices = @transform_1, window_bounds = array<i64: 128, 128>}, {pipeline_mode = #tpu.pipeline_mode<synchronous>, transform_indices = @transform_2, window_bounds = array<i64: 128, 128>}, {pipeline_mode = #tpu.pipeline_mode<synchronous>, transform_indices = @transform_3, window_bounds = array<i64: 1, 128>}, {transform_indices = @transform_4, window_bounds = array<i64: 128, 128>}]} {
    %c0_i32 = arith.constant 0 : i32
    %0 = arith.cmpi eq, %arg1, %c0_i32 : i32
    %1 = arith.extui %0 : i1 to i32
    %c0_i32_0 = arith.constant 0 : i32
    %2 = arith.cmpi ne, %1, %c0_i32_0 : i32
    scf.if %2 {
      %cst_12 = arith.constant 0.000000e+00 : f32
      %15 = vector.broadcast %cst_12 : f32 to vector<128x128xf32>
      %c0_13 = arith.constant 0 : index
      %c0_14 = arith.constant 0 : index
      %16 = vector.load %arg7[%c0_13, %c0_14] : memref<128x128xf32, #tpu.memory_space<vmem>>, vector<128x128xf32>
      tpu.vector_store %arg7[%c0_13, %c0_14], %15 {strides = array<i32>} : memref<128x128xf32, #tpu.memory_space<vmem>>, vector<128x128xf32>,
    } else {
    }
    %c0 = arith.constant 0 : index
    %c0_1 = arith.constant 0 : index
    %3 = vector.load %arg3[%c0, %c0_1] : memref<128x128xbf16, #tpu.memory_space<vmem>>, vector<128x128xbf16>
    %c0_2 = arith.constant 0 : index
    %c0_3 = arith.constant 0 : index
    %4 = vector.load %arg4[%c0_2, %c0_3] : memref<128x128xbf16, #tpu.memory_space<vmem>>, vector<128x128xbf16>
    %cst = arith.constant dense<0.000000e+00> : vector<128x128xf32>
    %5 = tpu.matmul %3, %4, %cst {dimension_numbers = #tpu.dot_dimension_numbers<[1], [0], [0], [1], [0, 0, 1, 1], [], []>} : vector<128x128xbf16>, vector<128x128xbf16>, vector<128x128xf32> -> vector<128x128xf32>
    %c0_4 = arith.constant 0 : index
    %c0_5 = arith.constant 0 : index
    %6 = vector.load %arg7[%c0_4, %c0_5] : memref<128x128xf32, #tpu.memory_space<vmem>>, vector<128x128xf32>
    %c0_6 = arith.constant 0 : index
    %c0_7 = arith.constant 0 : index
    %7 = vector.load %arg2[%c0_6, %c0_7] : memref<128x128xbf16, #tpu.memory_space<vmem>>, vector<128x128xbf16>
    %8 = arith.truncf %5 : vector<128x128xf32> to vector<128x128xbf16>
    %cst_8 = arith.constant dense<0.000000e+00> : vector<128x128xf32>
    %9 = tpu.matmul %7, %8, %cst_8 {dimension_numbers = #tpu.dot_dimension_numbers<[1], [0], [0], [1], [0, 0, 1, 1], [], []>} : vector<128x128xbf16>, vector<128x128xbf16>, vector<128x128xf32> -> vector<128x128xf32>
    %10 = arith.addf %6, %9 : vector<128x128xf32>
    %c0_9 = arith.constant 0 : index
    %c0_10 = arith.constant 0 : index
    %11 = vector.load %arg7[%c0_9, %c0_10] : memref<128x128xf32, #tpu.memory_space<vmem>>, vector<128x128xf32>
    tpu.vector_store %arg7[%c0_9, %c0_10], %10 {strides = array<i32>} : memref<128x128xf32, #tpu.memory_space<vmem>>, vector<128x128xf32>,
    %c1_i32 = arith.constant 1 : i32
    %12 = arith.cmpi eq, %arg1, %c1_i32 : i32
    %13 = arith.extui %12 : i1 to i32
    %c0_i32_11 = arith.constant 0 : i32
    %14 = arith.cmpi ne, %13, %c0_i32_11 : i32
    scf.if %14 {
      %c0_12 = arith.constant 0 : index
      %c0_13 = arith.constant 0 : index
      %15 = vector.load %arg7[%c0_12, %c0_13] : memref<128x128xf32, #tpu.memory_space<vmem>>, vector<128x128xf32>
      %c0_14 = arith.constant 0 : index
      %c0_15 = arith.constant 0 : index
      %16 = vector.load %arg5[%c0_14, %c0_15] : memref<1x128xf32, #tpu.memory_space<vmem>>, vector<1x128xf32>
      %17 = vector.broadcast %16 : vector<1x128xf32> to vector<128x128xf32>
      %18 = arith.addf %15, %17 : vector<128x128xf32>
      %cst_16 = arith.constant 0.000000e+00 : f32
      %19 = vector.broadcast %cst_16 : f32 to vector<128x128xf32>
      %20 = arith.maximumf %18, %19 : vector<128x128xf32>
      %21 = arith.truncf %20 : vector<128x128xf32> to vector<128x128xbf16>
      %c0_17 = arith.constant 0 : index
      %c0_18 = arith.constant 0 : index
      %22 = vector.load %arg6[%c0_17, %c0_18] : memref<128x128xbf16, #tpu.memory_space<vmem>>, vector<128x128xbf16>
      tpu.vector_store %arg6[%c0_17, %c0_18], %21 {strides = array<i32>} : memref<128x128xbf16, #tpu.memory_space<vmem>>, vector<128x128xbf16>,
    } else {
    }
    return
  }
  func.func @transform_0(%arg0: i32, %arg1: i32) -> (i32, i32) {
    %c0_i32 = arith.constant 0 : i32
    return %arg0, %arg1 : i32, i32
  }
  func.func @transform_1(%arg0: i32, %arg1: i32) -> (i32, i32) {
    %c0_i32 = arith.constant 0 : i32
    %c0_i32_0 = arith.constant 0 : i32
    return %arg1, %c0_i32 : i32, i32
  }
  func.func @transform_2(%arg0: i32, %arg1: i32) -> (i32, i32) {
    %c0_i32 = arith.constant 0 : i32
    %c0_i32_0 = arith.constant 0 : i32
    %c0_i32_1 = arith.constant 0 : i32
    return %c0_i32, %c0_i32_0 : i32, i32
  }
  func.func @transform_3(%arg0: i32, %arg1: i32) -> (i32, i32) {
    %c0_i32 = arith.constant 0 : i32
    %c0_i32_0 = arith.constant 0 : i32
    %c0_i32_1 = arith.constant 0 : i32
    return %c0_i32, %c0_i32_0 : i32, i32
  }
  func.func @transform_4(%arg0: i32, %arg1: i32) -> (i32, i32) {
    %c0_i32 = arith.constant 0 : i32
    %c0_i32_0 = arith.constant 0 : i32
    return %arg0, %c0_i32 : i32, i32
  }
}

module attributes {stable_mosaic.version = 11 : i64} {
  func.func @_gcn_layer_kernel(%arg0: i32, %arg1: i32, %arg2: memref<128x128xbf16, #tpu.memory_space<vmem>>, %arg3: memref<128x128xbf16, #tpu.memory_space<vmem>>, %arg4: memref<128x128xbf16, #tpu.memory_space<vmem>>, %arg5: memref<1x128xf32, #tpu.memory_space<vmem>>, %arg6: memref<128x128xf32, #tpu.memory_space<vmem>>, %arg7: memref<128x128xf32, #tpu.memory_space<vmem>>) attributes {dimension_semantics = [#tpu.dimension_semantics<parallel>, #tpu.dimension_semantics<arbitrary>], iteration_bounds = array<i64: 2, 2>, scalar_prefetch = 0 : i64, scratch_operands = 1 : i64, tpu.core_type = #tpu.core_type<tc>, window_params = [{transform_indices = @transform_0, window_bounds = array<i64: 128, 128>}, {transform_indices = @transform_1, window_bounds = array<i64: 128, 128>}, {pipeline_mode = #tpu.pipeline_mode<synchronous>, transform_indices = @transform_2, window_bounds = array<i64: 128, 128>}, {pipeline_mode = #tpu.pipeline_mode<synchronous>, transform_indices = @transform_3, window_bounds = array<i64: 1, 128>}, {transform_indices = @transform_4, window_bounds = array<i64: 128, 128>}]} {
    %c0_i32 = arith.constant 0 : i32
    %0 = arith.cmpi eq, %arg1, %c0_i32 : i32
    %1 = arith.extui %0 : i1 to i32
    %c0_i32_0 = arith.constant 0 : i32
    %2 = arith.cmpi ne, %1, %c0_i32_0 : i32
    scf.if %2 {
      %cst_12 = arith.constant 0.000000e+00 : f32
      %15 = vector.broadcast %cst_12 : f32 to vector<128x128xf32>
      %c0_13 = arith.constant 0 : index
      %c0_14 = arith.constant 0 : index
      %16 = vector.load %arg7[%c0_13, %c0_14] : memref<128x128xf32, #tpu.memory_space<vmem>>, vector<128x128xf32>
      tpu.vector_store %arg7[%c0_13, %c0_14], %15 {strides = array<i32>} : memref<128x128xf32, #tpu.memory_space<vmem>>, vector<128x128xf32>,
    } else {
    }
    %c0 = arith.constant 0 : index
    %c0_1 = arith.constant 0 : index
    %3 = vector.load %arg3[%c0, %c0_1] : memref<128x128xbf16, #tpu.memory_space<vmem>>, vector<128x128xbf16>
    %c0_2 = arith.constant 0 : index
    %c0_3 = arith.constant 0 : index
    %4 = vector.load %arg4[%c0_2, %c0_3] : memref<128x128xbf16, #tpu.memory_space<vmem>>, vector<128x128xbf16>
    %cst = arith.constant dense<0.000000e+00> : vector<128x128xf32>
    %5 = tpu.matmul %3, %4, %cst {dimension_numbers = #tpu.dot_dimension_numbers<[1], [0], [0], [1], [0, 0, 1, 1], [], []>} : vector<128x128xbf16>, vector<128x128xbf16>, vector<128x128xf32> -> vector<128x128xf32>
    %c0_4 = arith.constant 0 : index
    %c0_5 = arith.constant 0 : index
    %6 = vector.load %arg7[%c0_4, %c0_5] : memref<128x128xf32, #tpu.memory_space<vmem>>, vector<128x128xf32>
    %c0_6 = arith.constant 0 : index
    %c0_7 = arith.constant 0 : index
    %7 = vector.load %arg2[%c0_6, %c0_7] : memref<128x128xbf16, #tpu.memory_space<vmem>>, vector<128x128xbf16>
    %8 = arith.truncf %5 : vector<128x128xf32> to vector<128x128xbf16>
    %cst_8 = arith.constant dense<0.000000e+00> : vector<128x128xf32>
    %9 = tpu.matmul %7, %8, %cst_8 {dimension_numbers = #tpu.dot_dimension_numbers<[1], [0], [0], [1], [0, 0, 1, 1], [], []>} : vector<128x128xbf16>, vector<128x128xbf16>, vector<128x128xf32> -> vector<128x128xf32>
    %10 = arith.addf %6, %9 : vector<128x128xf32>
    %c0_9 = arith.constant 0 : index
    %c0_10 = arith.constant 0 : index
    %11 = vector.load %arg7[%c0_9, %c0_10] : memref<128x128xf32, #tpu.memory_space<vmem>>, vector<128x128xf32>
    tpu.vector_store %arg7[%c0_9, %c0_10], %10 {strides = array<i32>} : memref<128x128xf32, #tpu.memory_space<vmem>>, vector<128x128xf32>,
    %c1_i32 = arith.constant 1 : i32
    %12 = arith.cmpi eq, %arg1, %c1_i32 : i32
    %13 = arith.extui %12 : i1 to i32
    %c0_i32_11 = arith.constant 0 : i32
    %14 = arith.cmpi ne, %13, %c0_i32_11 : i32
    scf.if %14 {
      %c0_12 = arith.constant 0 : index
      %c0_13 = arith.constant 0 : index
      %15 = vector.load %arg7[%c0_12, %c0_13] : memref<128x128xf32, #tpu.memory_space<vmem>>, vector<128x128xf32>
      %c0_14 = arith.constant 0 : index
      %c0_15 = arith.constant 0 : index
      %16 = vector.load %arg5[%c0_14, %c0_15] : memref<1x128xf32, #tpu.memory_space<vmem>>, vector<1x128xf32>
      %17 = vector.broadcast %16 : vector<1x128xf32> to vector<128x128xf32>
      %18 = arith.addf %15, %17 : vector<128x128xf32>
      %c0_16 = arith.constant 0 : index
      %c0_17 = arith.constant 0 : index
      %19 = vector.load %arg6[%c0_16, %c0_17] : memref<128x128xf32, #tpu.memory_space<vmem>>, vector<128x128xf32>
      tpu.vector_store %arg6[%c0_16, %c0_17], %18 {strides = array<i32>} : memref<128x128xf32, #tpu.memory_space<vmem>>, vector<128x128xf32>,
    } else {
    }
    return
  }
  func.func @transform_0(%arg0: i32, %arg1: i32) -> (i32, i32) {
    %c0_i32 = arith.constant 0 : i32
    return %arg0, %arg1 : i32, i32
  }
  func.func @transform_1(%arg0: i32, %arg1: i32) -> (i32, i32) {
    %c0_i32 = arith.constant 0 : i32
    %c0_i32_0 = arith.constant 0 : i32
    return %arg1, %c0_i32 : i32, i32
  }
  func.func @transform_2(%arg0: i32, %arg1: i32) -> (i32, i32) {
    %c0_i32 = arith.constant 0 : i32
    %c0_i32_0 = arith.constant 0 : i32
    %c0_i32_1 = arith.constant 0 : i32
    return %c0_i32, %c0_i32_0 : i32, i32
  }
  func.func @transform_3(%arg0: i32, %arg1: i32) -> (i32, i32) {
    %c0_i32 = arith.constant 0 : i32
    %c0_i32_0 = arith.constant 0 : i32
    %c0_i32_1 = arith.constant 0 : i32
    return %c0_i32, %c0_i32_0 : i32, i32
  }
  func.func @transform_4(%arg0: i32, %arg1: i32) -> (i32, i32) {
    %c0_i32 = arith.constant 0 : i32
    %c0_i32_0 = arith.constant 0 : i32
    return %arg0, %c0_i32 : i32, i32
  }
}

</mosaic_0001>

<llo_original>
// kernel: _gcn_forward_impl.5
$region0: #{_gcn_forward_impl.5}
  #allocation0 [shape = 'u32[]', space=smem, size = 0x4, offset = 0x4, fixed_abs, tag = 'smem constant byte address 0x4 - core index']
  #allocation1 [shape = 'u32[72,128]{1,0:T(1,128)}', space=vmem, size = 0x9000, scoped, tag = 'internal scratch']
  #allocation2 [shape = 'f32[128,128]{1,0:T(8,128)}', space=vmem, size = 0x10000, scoped, tag = 'scratch operand']
  %s0 = inlined_call_operand.vmem [shape: bf16[256,256], index: 0, kind: input, shape index: {}]
  %s1 = inlined_call_operand.vmem [shape: bf16[256,128], index: 1, kind: input, shape index: {}]
  %s2 = inlined_call_operand.vmem [shape: bf16[128,128], index: 2, kind: input, shape index: {}]
  %s3 = inlined_call_operand.vmem [shape: f32[1,128], index: 3, kind: input, shape index: {}]
  %s4 = inlined_call_operand.vmem [shape: f32[256,128], index: 4, kind: output, shape index: {}]
  %s5 = sld [smem:[#allocation0]]
  $region98: #{_gcn_forward_impl.5} parent=0
    _
  %s7 = ssub.s32 1, %s5
  %s8 = scalar_select 0, %s7, %s5
  $region1: #{_gcn_forward_impl.5} parent=0
    #allocation3 [shape = 'u8[65536]{0}', space=vmem, size = 0x10000, scoped, tag = 'input window, operand 0']
    loop: start=0, step=1, limit=6
    $region2: #{_gcn_forward_impl.5} parent=1 // loop_pre_header
      _
    $region3: #{_gcn_forward_impl.5} parent=1 // loop_header
      %s10 = sphi 0, %s14
      %p11 = scmp.ge.s32.totalorder %s10, 6
      %s17 = sphi 0, %s29
      %s18 = sphi 0, %s25
      %s19 = sphi 0, %s17
      %s20 = sphi 0, %s18
      %s21 = sphi 0, %s19
      %s22 = sphi 0, %s20
      %s34 = sphi 0, %s36
      %s37 = sphi 0, %s34
      %s38 = sphi 0, %s37
      %s54 = sphi 0, %s38
      %s60 = sphi 0, %s62
      %s63 = sphi 0, %s60
      %s64 = sphi 0, %s63
      %s80 = sphi 0, %s64
      %s84 = sphi 0, %s84
      %s86 = sphi 0, %s84
      %s87 = sphi 0, %s86
      %s101 = sphi 0, %s87
      %s105 = sphi 0, %s105
      %s107 = sphi 0, %s105
      %s108 = sphi 0, %s107
      %s122 = sphi 0, %s108
      %s128 = sphi 0, %s130
      %s131 = sphi 0, %s128
      %s132 = sphi 0, %s131
      %s148 = sphi 0, %s132
    $region4: #{_gcn_forward_impl.5} parent=1 // loop_header_branch
      %13 = sbr.rel (%p11) target = $region8
    $region5: #{_gcn_forward_impl.5} parent=1 // loop_body
      %s15 = ssub.s32 %s10, 1
      %s16 = ssub.s32 %s10, 2
      %s23 = sadd.s32 1, %s18
      %p24 = scmp.ge.s32.totalorder %s23, 2
      %s25 = scalar_select %p24, 0, %s23
      %s26 = sadd.s32 1, %s17
      %s27 = scalar_select %p24, %s26, %s17
      %p28 = scmp.ge.s32.totalorder %s27, 2
      %s29 = scalar_select %p28, 0, %s27
      %s30 = ssub.s32 %s17, %s29
      %s31 = ssub.s32 %s18, %s25
      %s32 = sor.u32 %s30, %s31
      %p33 = scmp.eq.s32.totalorder %s32, 0
      %s35 = sadd.s32 %s34, 1
      %s36 = scalar_select %p33, %s34, %s35
      %p39 = pneg %p33
      %p40 = scmp.eq.s32.totalorder %s10, 3
      %p41 = por %p39, %p40
      %p42 = scmp.ne.s32.totalorder %s34, %s37
      %p43 = scmp.eq.s32.totalorder %s10, 0
      %p44 = por %p42, %p43
      %p45 = scmp.ne.s32.totalorder %s34, %s37
      %p46 = scmp.eq.s32.totalorder %s15, 3
      %p47 = por %p45, %p46
      %p48 = scmp.ne.s32.totalorder %s37, %s38
      %p49 = scmp.eq.s32.totalorder %s15, 0
      %p50 = por %p48, %p49
      %p51 = scmp.ne.s32.totalorder %s37, %s38
      %p52 = scmp.eq.s32.totalorder %s16, 3
      %p53 = por %p51, %p52
      %p55 = scmp.ne.s32.totalorder %s38, %s54
      %p56 = scmp.eq.s32.totalorder %s16, 0
      %p57 = por %p55, %p56
      %s58 = ssub.s32 %s18, %s25
      %p59 = scmp.eq.s32.totalorder %s58, 0
      %s61 = sadd.s32 %s60, 1
      %s62 = scalar_select %p59, %s60, %s61
      %p65 = pneg %p59
      %p66 = scmp.eq.s32.totalorder %s10, 3
      %p67 = por %p65, %p66
      %p68 = scmp.ne.s32.totalorder %s60, %s63
      %p69 = scmp.eq.s32.totalorder %s10, 0
      %p70 = por %p68, %p69
      %p71 = scmp.ne.s32.totalorder %s60, %s63
      %p72 = scmp.eq.s32.totalorder %s15, 3
      %p73 = por %p71, %p72
      %p74 = scmp.ne.s32.totalorder %s63, %s64
      %p75 = scmp.eq.s32.totalorder %s15, 0
      %p76 = por %p74, %p75
      %p77 = scmp.ne.s32.totalorder %s63, %s64
      %p78 = scmp.eq.s32.totalorder %s16, 3
      %p79 = por %p77, %p78
      %p81 = scmp.ne.s32.totalorder %s64, %s80
      %p82 = scmp.eq.s32.totalorder %s16, 0
      %p83 = por %p81, %p82
      %s85 = sadd.s32 %s84, 1
      %p88 = scmp.eq.s32.totalorder %s10, 3
      %p89 = scmp.ne.s32.totalorder %s84, %s86
      %p90 = scmp.eq.s32.totalorder %s10, 0
      %p91 = por %p89, %p90
      %p92 = scmp.ne.s32.totalorder %s84, %s86
      %p93 = scmp.eq.s32.totalorder %s15, 3
      %p94 = por %p92, %p93
      %p95 = scmp.ne.s32.totalorder %s86, %s87
      %p96 = scmp.eq.s32.totalorder %s15, 0
      %p97 = por %p95, %p96
      %p98 = scmp.ne.s32.totalorder %s86, %s87
      %p99 = scmp.eq.s32.totalorder %s16, 3
      %p100 = por %p98, %p99
      %p102 = scmp.ne.s32.totalorder %s87, %s101
      %p103 = scmp.eq.s32.totalorder %s16, 0
      %p104 = por %p102, %p103
      %s106 = sadd.s32 %s105, 1
      %p109 = scmp.eq.s32.totalorder %s10, 3
      %p110 = scmp.ne.s32.totalorder %s105, %s107
      %p111 = scmp.eq.s32.totalorder %s10, 0
      %p112 = por %p110, %p111
      %p113 = scmp.ne.s32.totalorder %s105, %s107
      %p114 = scmp.eq.s32.totalorder %s15, 3
      %p115 = por %p113, %p114
      %p116 = scmp.ne.s32.totalorder %s107, %s108
      %p117 = scmp.eq.s32.totalorder %s15, 0
      %p118 = por %p116, %p117
      %p119 = scmp.ne.s32.totalorder %s107, %s108
      %p120 = scmp.eq.s32.totalorder %s16, 3
      %p121 = por %p119, %p120
      %p123 = scmp.ne.s32.totalorder %s108, %s122
      %p124 = scmp.eq.s32.totalorder %s16, 0
      %p125 = por %p123, %p124
      %s126 = ssub.s32 %s17, %s29
      %p127 = scmp.eq.s32.totalorder %s126, 0
      %s129 = sadd.s32 %s128, 1
      %s130 = scalar_select %p127, %s128, %s129
      %p133 = pneg %p127
      %p134 = scmp.eq.s32.totalorder %s10, 3
      %p135 = por %p133, %p134
      %p136 = scmp.ne.s32.totalorder %s128, %s131
      %p137 = scmp.eq.s32.totalorder %s10, 0
      %p138 = por %p136, %p137
      %p139 = scmp.ne.s32.totalorder %s128, %s131
      %p140 = scmp.eq.s32.totalorder %s15, 3
      %p141 = por %p139, %p140
      %p142 = scmp.ne.s32.totalorder %s131, %s132
      %p143 = scmp.eq.s32.totalorder %s15, 0
      %p144 = por %p142, %p143
      %p145 = scmp.ne.s32.totalorder %s131, %s132
      %p146 = scmp.eq.s32.totalorder %s16, 3
      %p147 = por %p145, %p146
      %p149 = scmp.ne.s32.totalorder %s132, %s148
      %p150 = scmp.eq.s32.totalorder %s16, 0
      %p151 = por %p149, %p150
      %p152 = scmp.le.s32.totalorder 1, %s10
      %p153 = scmp.lt.s32.totalorder %s10, 5
      %p154 = pnand %p152, %p153
      %p155 = pneg %p154
      // Predicated region
      $region9: #{_gcn_forward_impl.5} parent=5 // pred_check
        _
      $region10: #{_gcn_forward_impl.5} parent=5 // pred_check_branch
        %157 = sbr.rel (%p154) target = $region12
      $region11: #{_gcn_forward_impl.5} parent=5 // pred_region
        %s158 = ssub.s32 %s10, 1
        // Predicated region
        $region13: #{_gcn_forward_impl.5} parent=11 // pred_check
          %p159 = pneg %p97
        $region14: #{_gcn_forward_impl.5} parent=11 // pred_check_branch
          %161 = sbr.rel (%p159) target = $region16
        $region15: #{_gcn_forward_impl.5} parent=11 // pred_region
          _
        $region16: #{_gcn_forward_impl.5} parent=11 // pred_fallthru
          _
        // Predicated region
        $region17: #{_gcn_forward_impl.5} parent=11 // pred_check
          %p162 = pneg %p118
        $region18: #{_gcn_forward_impl.5} parent=11 // pred_check_branch
          %164 = sbr.rel (%p162) target = $region20
        $region19: #{_gcn_forward_impl.5} parent=11 // pred_region
          _
        $region20: #{_gcn_forward_impl.5} parent=11 // pred_fallthru
          _
      $region12: #{_gcn_forward_impl.5} parent=5 // pred_fallthru
        _
      %p165 = scmp.lt.s32.totalorder %s10, 4
      // Predicated region
      $region21: #{_gcn_forward_impl.5} parent=5 // pred_check
        %p166 = pneg %p165
      $region22: #{_gcn_forward_impl.5} parent=5 // pred_check_branch
        %168 = sbr.rel (%p166) target = $region24
      $region23: #{_gcn_forward_impl.5} parent=5 // pred_region
        // Predicated region
        $region25: #{_gcn_forward_impl.5} parent=23 // pred_check
          %p169 = pneg %p44
        $region26: #{_gcn_forward_impl.5} parent=23 // pred_check_branch
          %171 = sbr.rel (%p169) target = $region28
        $region27: #{_gcn_forward_impl.5} parent=23 // pred_region
          %s172 = sand.u32 %s34, 1
          %s173 = sand.u32 %s34, 1
          %s174 = smul.addr %s173, 64
          %s175 = scalar_lea.vmem [#allocation3], %s174
          %s176 = smul.u32 16, %s17
          %s177 = smul.addr %s176, 2
          %s178 = sadd.s32 %s18, %s177
          %s179 = smul.addr %s178, 4
          %s180 = scalar_lea.vmem %s0, %s179
          // Predicated region
          $region29: #{_gcn_forward_impl.5} parent=27 // pred_check
            _
          $region30: #{_gcn_forward_impl.5} parent=27 // pred_check_branch
            %182 = sbr.rel (0) target = $region32
          $region31: #{_gcn_forward_impl.5} parent=27 // pred_region
            // Predicated region
            $region33: #{_gcn_forward_impl.5} parent=31 // pred_check
              _
            $region34: #{_gcn_forward_impl.5} parent=31 // pred_check_branch
              %184 = sbr.rel target = $region36
            $region35: #{_gcn_forward_impl.5} parent=31 // pred_region
              // Predicated region
              $region48: #{_gcn_forward_impl.5} parent=35 // pred_check
                _
              $region49: #{_gcn_forward_impl.5} parent=35 // pred_check_branch
                %230 = sbr.rel (0) target = $region51
              $region50: #{_gcn_forward_impl.5} parent=35 // pred_region
                loop: start=0, step=1, limit=1
                $region52: #{_gcn_forward_impl.5} parent=50 // loop_pre_header
                  _
                $region53: #{_gcn_forward_impl.5} parent=50 // loop_header
                  %s232 = sphi 0, %s236
                  %p233 = scmp.ge.s32.totalorder %s232, 1
                  %s237 = sphi %s180, %s180
                  %s238 = sphi %s175, %s175
                $region54: #{_gcn_forward_impl.5} parent=50 // loop_header_branch
                  %235 = sbr.rel (%p233) target = $region58
                $region55: #{_gcn_forward_impl.5} parent=50 // loop_body
                  _
                $region56: #{_gcn_forward_impl.5} parent=50 // loop_footer
                  %s236 = sadd.s32 1, %s232
                $region57: #{_gcn_forward_impl.5} parent=50 // loop_footer_branch
                  %231 = sbr.rel target = $region53
                $region58: #{_gcn_forward_impl.5} parent=50 // loop_exit
                  _
                %s240 = ssub.s32 16, 1
                loop: start=0, step=1, limit=1
                $region59: #{_gcn_forward_impl.5} parent=50 // loop_pre_header
                  _
                $region60: #{_gcn_forward_impl.5} parent=50 // loop_header
                  %s242 = sphi 0, %s246
                  %p243 = scmp.ge.s32.totalorder %s242, 1
                  %s247 = sphi %s180, %s180
                  %s248 = sphi %s175, %s175
                $region61: #{_gcn_forward_impl.5} parent=50 // loop_header_branch
                  %245 = sbr.rel (%p243) target = $region65
                $region62: #{_gcn_forward_impl.5} parent=50 // loop_body
                  %v249 = vld [vmem:[%s247] sm:%s240]
                  %250 = vst [vmem:[%s248] sm:%s240] %v249
                  %v251 = vld [vmem:[%s247 + $0x8] sm:%s240]
                  %252 = vst [vmem:[%s248 + $0x4] sm:%s240] %v251
                  %v253 = vld [vmem:[%s247 + $0x10] sm:%s240]
                  %254 = vst [vmem:[%s248 + $0x8] sm:%s240] %v253
                  %v255 = vld [vmem:[%s247 + $0x18] sm:%s240]
                  %256 = vst [vmem:[%s248 + $0xc] sm:%s240] %v255
                  %v257 = vld [vmem:[%s247 + $0x20] sm:%s240]
                  %258 = vst [vmem:[%s248 + $0x10] sm:%s240] %v257
                  %v259 = vld [vmem:[%s247 + $0x28] sm:%s240]
                  %260 = vst [vmem:[%s248 + $0x14] sm:%s240] %v259
                  %v261 = vld [vmem:[%s247 + $0x30] sm:%s240]
                  %262 = vst [vmem:[%s248 + $0x18] sm:%s240] %v261
                  %v263 = vld [vmem:[%s247 + $0x38] sm:%s240]
                  %264 = vst [vmem:[%s248 + $0x1c] sm:%s240] %v263
                  %v265 = vld [vmem:[%s247 + $0x40] sm:%s240]
                  %266 = vst [vmem:[%s248 + $0x20] sm:%s240] %v265
                  %v267 = vld [vmem:[%s247 + $0x48] sm:%s240]
                  %268 = vst [vmem:[%s248 + $0x24] sm:%s240] %v267
                  %v269 = vld [vmem:[%s247 + $0x50] sm:%s240]
                  %270 = vst [vmem:[%s248 + $0x28] sm:%s240] %v269
                  %v271 = vld [vmem:[%s247 + $0x58] sm:%s240]
                  %272 = vst [vmem:[%s248 + $0x2c] sm:%s240] %v271
                  %v273 = vld [vmem:[%s247 + $0x60] sm:%s240]
                  %274 = vst [vmem:[%s248 + $0x30] sm:%s240] %v273
                  %v275 = vld [vmem:[%s247 + $0x68] sm:%s240]
                  %276 = vst [vmem:[%s248 + $0x34] sm:%s240] %v275
                  %v277 = vld [vmem:[%s247 + $0x70] sm:%s240]
                  %278 = vst [vmem:[%s248 + $0x38] sm:%s240] %v277
                  %v279 = vld [vmem:[%s247 + $0x78] sm:%s240]
                  %280 = vst [vmem:[%s248 + $0x3c] sm:%s240] %v279
                $region63: #{_gcn_forward_impl.5} parent=50 // loop_footer
                  %s246 = sadd.s32 1, %s242
                $region64: #{_gcn_forward_impl.5} parent=50 // loop_footer_branch
                  %241 = sbr.rel target = $region60
                $region65: #{_gcn_forward_impl.5} parent=50 // loop_exit
                  _
              $region51: #{_gcn_forward_impl.5} parent=35 // pred_fallthru
                _
            $region36: #{_gcn_forward_impl.5} parent=31 // pred_fallthru
              _
            // Predicated region
            $region37: #{_gcn_forward_impl.5} parent=31 // pred_check
              _
            $region38: #{_gcn_forward_impl.5} parent=31 // pred_check_branch
              %186 = sbr.rel (0) target = $region40
            $region39: #{_gcn_forward_impl.5} parent=31 // pred_region
              %s188 = ssub.s32 16, 1
              loop: start=0, step=1, limit=1
              $region41: #{_gcn_forward_impl.5} parent=39 // loop_pre_header
                _
              $region42: #{_gcn_forward_impl.5} parent=39 // loop_header
                %s190 = sphi 0, %s194
                %p191 = scmp.ge.s32.totalorder %s190, 1
                %s195 = sphi %s180, %s180
                %s196 = sphi %s175, %s175
              $region43: #{_gcn_forward_impl.5} parent=39 // loop_header_branch
                %193 = sbr.rel (%p191) target = $region47
              $region44: #{_gcn_forward_impl.5} parent=39 // loop_body
                %v197 = vld [vmem:[%s195] sm:%s188]
                %198 = vst [vmem:[%s196] sm:%s188] %v197
                %v199 = vld [vmem:[%s195 + $0x8] sm:%s188]
                %200 = vst [vmem:[%s196 + $0x4] sm:%s188] %v199
                %v201 = vld [vmem:[%s195 + $0x10] sm:%s188]
                %202 = vst [vmem:[%s196 + $0x8] sm:%s188] %v201
                %v203 = vld [vmem:[%s195 + $0x18] sm:%s188]
                %204 = vst [vmem:[%s196 + $0xc] sm:%s188] %v203
                %v205 = vld [vmem:[%s195 + $0x20] sm:%s188]
                %206 = vst [vmem:[%s196 + $0x10] sm:%s188] %v205
                %v207 = vld [vmem:[%s195 + $0x28] sm:%s188]
                %208 = vst [vmem:[%s196 + $0x14] sm:%s188] %v207
                %v209 = vld [vmem:[%s195 + $0x30] sm:%s188]
                %210 = vst [vmem:[%s196 + $0x18] sm:%s188] %v209
                %v211 = vld [vmem:[%s195 + $0x38] sm:%s188]
                %212 = vst [vmem:[%s196 + $0x1c] sm:%s188] %v211
                %v213 = vld [vmem:[%s195 + $0x40] sm:%s188]
                %214 = vst [vmem:[%s196 + $0x20] sm:%s188] %v213
                %v215 = vld [vmem:[%s195 + $0x48] sm:%s188]
                %216 = vst [vmem:[%s196 + $0x24] sm:%s188] %v215
                %v217 = vld [vmem:[%s195 + $0x50] sm:%s188]
                %218 = vst [vmem:[%s196 + $0x28] sm:%s188] %v217
                %v219 = vld [vmem:[%s195 + $0x58] sm:%s188]
                %220 = vst [vmem:[%s196 + $0x2c] sm:%s188] %v219
                %v221 = vld [vmem:[%s195 + $0x60] sm:%s188]
                %222 = vst [vmem:[%s196 + $0x30] sm:%s188] %v221
                %v223 = vld [vmem:[%s195 + $0x68] sm:%s188]
                %224 = vst [vmem:[%s196 + $0x34] sm:%s188] %v223
                %v225 = vld [vmem:[%s195 + $0x70] sm:%s188]
                %226 = vst [vmem:[%s196 + $0x38] sm:%s188] %v225
                %v227 = vld [vmem:[%s195 + $0x78] sm:%s188]
                %228 = vst [vmem:[%s196 + $0x3c] sm:%s188] %v227
              $region45: #{_gcn_forward_impl.5} parent=39 // loop_footer
                %s194 = sadd.s32 1, %s190
              $region46: #{_gcn_forward_impl.5} parent=39 // loop_footer_branch
                %189 = sbr.rel target = $region42
              $region47: #{_gcn_forward_impl.5} parent=39 // loop_exit
                _
            $region40: #{_gcn_forward_impl.5} parent=31 // pred_fallthru
              _
          $region32: #{_gcn_forward_impl.5} parent=27 // pred_fallthru
            _
          %281 = vnop
        $region28: #{_gcn_forward_impl.5} parent=23 // pred_fallthru
          _
        // Predicated region
        $region66: #{_gcn_forward_impl.5} parent=23 // pred_check
          %p282 = pneg %p70
        $region67: #{_gcn_forward_impl.5} parent=23 // pred_check_branch
          %284 = sbr.rel (%p282) target = $region69
        $region68: #{_gcn_forward_impl.5} parent=23 // pred_region
          %s285 = smul.u32 16, %s18
          %p286 = scmp.lt.s32.totalorder %s285, 31
          %s287 = scalar_select %p286, %s285, 31
          %s288 = smul.addr %s287, 4
          %s289 = scalar_lea.vmem %s1, %s288
          %s290 = smul.u32 16, %s18
        $region69: #{_gcn_forward_impl.5} parent=23 // pred_fallthru
          _
      $region24: #{_gcn_forward_impl.5} parent=5 // pred_fallthru
        _
      %p291 = scmp.le.s32.totalorder 1, %s10
      %p292 = scmp.lt.s32.totalorder %s10, 5
      %p293 = pnand %p291, %p292
      %p294 = pneg %p293
      // Predicated region
      $region70: #{_gcn_forward_impl.5} parent=5 // pred_check
        _
      $region71: #{_gcn_forward_impl.5} parent=5 // pred_check_branch
        %296 = sbr.rel (%p293) target = $region73
      $region72: #{_gcn_forward_impl.5} parent=5 // pred_region
        %s297 = ssub.s32 %s10, 1
        %s298 = sand.u32 %s37, 1
        %s299 = sand.u32 %s37, 1
        %s300 = smul.addr %s299, 64
        %s301 = scalar_lea.vmem [#allocation3], %s300
        // Predicated region
        $region74: #{_gcn_forward_impl.5} parent=72 // pred_check
          %p302 = pneg %p50
        $region75: #{_gcn_forward_impl.5} parent=72 // pred_check_branch
          %304 = sbr.rel (%p302) target = $region77
        $region76: #{_gcn_forward_impl.5} parent=72 // pred_region
          _
        $region77: #{_gcn_forward_impl.5} parent=72 // pred_fallthru
          _
        %s305 = sand.u32 %s37, 1
        %s306 = sand.u32 %s37, 1
        %s307 = smul.addr %s306, 64
        %s308 = scalar_lea.vmem [#allocation3], %s307
        %p309 = pneg %p50
        %p310 = pneg %p47
        %s311 = smul.u32 16, %s20
        %p312 = scmp.lt.s32.totalorder %s311, 31
        %s313 = scalar_select %p312, %s311, 31
        %s314 = smul.addr %s313, 4
        %s315 = scalar_lea.vmem %s1, %s314
        %p316 = pneg %p76
        %p317 = pneg %p73
        %p318 = pneg %p97
        %p319 = pneg %p94
        %p320 = pneg %p118
        %p321 = pneg %p115
        %p322 = pneg %p144
        %p323 = pneg %p141
        %s324 = smul.u32 16, %s19
        %p325 = scmp.lt.s32.totalorder %s324, 31
        %s326 = scalar_select %p325, %s324, 31
        %s327 = smul.addr %s326, 8
        %s328 = scalar_lea.vmem %s4, %s327
        %s329 = smul.u32 16, %s19
        %s330 = smul.u32 16, %s20
        %p331 = scmp.lt.s32.totalorder %s330, 31
        %s332 = scalar_select %p331, %s330, 31
        %s333 = smul.addr %s332, 4
        %s334 = scalar_lea.vmem %s1, %s333
        %s335 = smul.u32 16, %s20
        %s336 = smul.u32 16, %s19
        %p337 = scmp.lt.s32.totalorder %s336, 31
        %s338 = scalar_select %p337, %s336, 31
        %s339 = smul.addr %s338, 8
        %s340 = scalar_lea.vmem %s4, %s339
        %s341 = smul.u32 16, %s19
        %p342 = scmp.eq.s32.totalorder %s20, 0
        // Predicated region
        $region78: #{_gcn_forward_impl.5} parent=72 // pred_check
          %p343 = pneg %p342
        $region79: #{_gcn_forward_impl.5} parent=72 // pred_check_branch
          %345 = sbr.rel (%p343) target = $region81
        $region80: #{_gcn_forward_impl.5} parent=72 // pred_region
          %346 = vst [vmem:[#allocation2] sm:$0xff] 0.0
          %347 = vst [vmem:[#allocation2 + $0x8] sm:$0xff] 0.0
          %348 = vst [vmem:[#allocation2 + $0x10] sm:$0xff] 0.0
          %349 = vst [vmem:[#allocation2 + $0x18] sm:$0xff] 0.0
          %350 = vst [vmem:[#allocation2 + $0x20] sm:$0xff] 0.0
          %351 = vst [vmem:[#allocation2 + $0x28] sm:$0xff] 0.0
          %352 = vst [vmem:[#allocation2 + $0x30] sm:$0xff] 0.0
          %353 = vst [vmem:[#allocation2 + $0x38] sm:$0xff] 0.0
          %354 = vst [vmem:[#allocation2 + $0x40] sm:$0xff] 0.0
          %355 = vst [vmem:[#allocation2 + $0x48] sm:$0xff] 0.0
          %356 = vst [vmem:[#allocation2 + $0x50] sm:$0xff] 0.0
          %357 = vst [vmem:[#allocation2 + $0x58] sm:$0xff] 0.0
          %358 = vst [vmem:[#allocation2 + $0x60] sm:$0xff] 0.0
          %359 = vst [vmem:[#allocation2 + $0x68] sm:$0xff] 0.0
          %360 = vst [vmem:[#allocation2 + $0x70] sm:$0xff] 0.0
          %361 = vst [vmem:[#allocation2 + $0x78] sm:$0xff] 0.0
        $region81: #{_gcn_forward_impl.5} parent=72 // pred_fallthru
          _
        %v362 = vld [vmem:[%s334] sm:$0xf]
        %v363 = vld [vmem:[%s334 + $0x4] sm:$0xf]
        %v364 = vld [vmem:[%s334 + $0x8] sm:$0xf]
        %v365 = vld [vmem:[%s334 + $0xc] sm:$0xf]
        %v366 = vld [vmem:[%s334 + $0x10] sm:$0xf]
        %v367 = vld [vmem:[%s334 + $0x14] sm:$0xf]
        %v368 = vld [vmem:[%s334 + $0x18] sm:$0xf]
        %v369 = vld [vmem:[%s334 + $0x1c] sm:$0xf]
        %v370 = vld [vmem:[%s334 + $0x20] sm:$0xf]
        %v371 = vld [vmem:[%s334 + $0x24] sm:$0xf]
        %v372 = vld [vmem:[%s334 + $0x28] sm:$0xf]
        %v373 = vld [vmem:[%s334 + $0x2c] sm:$0xf]
        %v374 = vld [vmem:[%s334 + $0x30] sm:$0xf]
        %v375 = vld [vmem:[%s334 + $0x34] sm:$0xf]
        %v376 = vld [vmem:[%s334 + $0x38] sm:$0xf]
        %v377 = vld [vmem:[%s334 + $0x3c] sm:$0xf]
        %v378 = vld [vmem:[%s2] sm:$0xf]
        %v379 = vld [vmem:[%s2 + $0x4] sm:$0xf]
        %v380 = vld [vmem:[%s2 + $0x8] sm:$0xf]
        %v381 = vld [vmem:[%s2 + $0xc] sm:$0xf]
        %v382 = vld [vmem:[%s2 + $0x10] sm:$0xf]
        %v383 = vld [vmem:[%s2 + $0x14] sm:$0xf]
        %v384 = vld [vmem:[%s2 + $0x18] sm:$0xf]
        %v385 = vld [vmem:[%s2 + $0x1c] sm:$0xf]
        %v386 = vld [vmem:[%s2 + $0x20] sm:$0xf]
        %v387 = vld [vmem:[%s2 + $0x24] sm:$0xf]
        %v388 = vld [vmem:[%s2 + $0x28] sm:$0xf]
        %v389 = vld [vmem:[%s2 + $0x2c] sm:$0xf]
        %v390 = vld [vmem:[%s2 + $0x30] sm:$0xf]
        %v391 = vld [vmem:[%s2 + $0x34] sm:$0xf]
        %v392 = vld [vmem:[%s2 + $0x38] sm:$0xf]
        %v393 = vld [vmem:[%s2 + $0x3c] sm:$0xf]
        %v410 = vunpack.c.l.b16 %v362
        %v411 = vunpack.c.l.b16 %v363
        %v412 = vunpack.c.l.b16 %v364
        %v413 = vunpack.c.l.b16 %v365
        %v414 = vunpack.c.l.b16 %v366
        %v415 = vunpack.c.l.b16 %v367
        %v416 = vunpack.c.l.b16 %v368
        %v417 = vunpack.c.l.b16 %v369
        %v418 = vunpack.c.l.b16 %v370
        %v419 = vunpack.c.l.b16 %v371
        %v420 = vunpack.c.l.b16 %v372
        %v421 = vunpack.c.l.b16 %v373
        %v422 = vunpack.c.l.b16 %v374
        %v423 = vunpack.c.l.b16 %v375
        %v424 = vunpack.c.l.b16 %v376
        %v425 = vunpack.c.l.b16 %v377
        %v426 = vpack.c.b16 %v411, %v410
        %v427 = vpack.c.b16 %v413, %v412
        %v428 = vpack.c.b16 %v415, %v414
        %v429 = vpack.c.b16 %v417, %v416
        %v430 = vpack.c.b16 %v419, %v418
        %v431 = vpack.c.b16 %v421, %v420
        %v432 = vpack.c.b16 %v423, %v422
        %v433 = vpack.c.b16 %v425, %v424
        %v458 = vunpack.c.l.b16 %v378
        %v459 = vunpack.c.l.b16 %v379
        %v460 = vunpack.c.l.b16 %v380
        %v461 = vunpack.c.l.b16 %v381
        %v462 = vunpack.c.l.b16 %v382
        %v463 = vunpack.c.l.b16 %v383
        %v464 = vunpack.c.l.b16 %v384
        %v465 = vunpack.c.l.b16 %v385
        %v466 = vunpack.c.l.b16 %v386
        %v467 = vunpack.c.l.b16 %v387
        %v468 = vunpack.c.l.b16 %v388
        %v469 = vunpack.c.l.b16 %v389
        %v470 = vunpack.c.l.b16 %v390
        %v471 = vunpack.c.l.b16 %v391
        %v472 = vunpack.c.l.b16 %v392
        %v473 = vunpack.c.l.b16 %v393
        %v474 = vpack.c.b16 %v459, %v458
        %v475 = vpack.c.b16 %v461, %v460
        %v476 = vpack.c.b16 %v463, %v462
        %v477 = vpack.c.b16 %v465, %v464
        %v478 = vpack.c.b16 %v467, %v466
        %v479 = vpack.c.b16 %v469, %v468
        %v480 = vpack.c.b16 %v471, %v470
        %v481 = vpack.c.b16 %v473, %v472
        %490 = vmatpush.bf16.msra.mxu0 %v481
        %491 = vmatpush.bf16.msra.mxu0 %v480
        %492 = vmatpush.bf16.msra.mxu0 %v479
        %493 = vmatpush.bf16.msra.mxu0 %v478
        %494 = vmatpush.bf16.msra.mxu0 %v477
        %495 = vmatpush.bf16.msra.mxu0 %v476
        %496 = vmatpush.bf16.msra.mxu0 %v475
        %497 = vmatpush.bf16.msra.mxu0 %v474
        %498 = vmatmul.bf16.gmra.mxu0 %v426
        %v499 = vpop.f32.mrf.mxu0
        %v500 = vadd.f32 0.0, %v499
        %v501 = vpop.f32.mrf.mxu0
        %v502 = vadd.f32 0.0, %v501
        %503 = vmatmul.bf16.gmra.mxu0 %v427
        %v504 = vpop.f32.mrf.mxu0
        %v505 = vadd.f32 0.0, %v504
        %v506 = vpop.f32.mrf.mxu0
        %v507 = vadd.f32 0.0, %v506
        %508 = vmatmul.bf16.gmra.mxu0 %v428
        %v509 = vpop.f32.mrf.mxu0
        %v510 = vadd.f32 0.0, %v509
        %v511 = vpop.f32.mrf.mxu0
        %v512 = vadd.f32 0.0, %v511
        %513 = vmatmul.bf16.gmra.mxu0 %v429
        %v514 = vpop.f32.mrf.mxu0
        %v515 = vadd.f32 0.0, %v514
        %v516 = vpop.f32.mrf.mxu0
        %v517 = vadd.f32 0.0, %v516
        %518 = vmatmul.bf16.gmra.mxu0 %v430
        %v519 = vpop.f32.mrf.mxu0
        %v520 = vadd.f32 0.0, %v519
        %v521 = vpop.f32.mrf.mxu0
        %v522 = vadd.f32 0.0, %v521
        %523 = vmatmul.bf16.gmra.mxu0 %v431
        %v524 = vpop.f32.mrf.mxu0
        %v525 = vadd.f32 0.0, %v524
        %v526 = vpop.f32.mrf.mxu0
        %v527 = vadd.f32 0.0, %v526
        %528 = vmatmul.bf16.gmra.mxu0 %v432
        %v529 = vpop.f32.mrf.mxu0
        %v530 = vadd.f32 0.0, %v529
        %v531 = vpop.f32.mrf.mxu0
        %v532 = vadd.f32 0.0, %v531
        %533 = vmatmul.bf16.gmra.mxu0 %v433
        %v534 = vpop.f32.mrf.mxu0
        %v535 = vadd.f32 0.0, %v534
        %v536 = vpop.f32.mrf.mxu0
        %v537 = vadd.f32 0.0, %v536
        %538 = vdwg.mxu0
        %v539 = vld [vmem:[#allocation2] sm:$0xff]
        %v540 = vld [vmem:[#allocation2 + $0x8] sm:$0xff]
        %v541 = vld [vmem:[#allocation2 + $0x10] sm:$0xff]
        %v542 = vld [vmem:[#allocation2 + $0x18] sm:$0xff]
        %v543 = vld [vmem:[#allocation2 + $0x20] sm:$0xff]
        %v544 = vld [vmem:[#allocation2 + $0x28] sm:$0xff]
        %v545 = vld [vmem:[#allocation2 + $0x30] sm:$0xff]
        %v546 = vld [vmem:[#allocation2 + $0x38] sm:$0xff]
        %v547 = vld [vmem:[#allocation2 + $0x40] sm:$0xff]
        %v548 = vld [vmem:[#allocation2 + $0x48] sm:$0xff]
        %v549 = vld [vmem:[#allocation2 + $0x50] sm:$0xff]
        %v550 = vld [vmem:[#allocation2 + $0x58] sm:$0xff]
        %v551 = vld [vmem:[#allocation2 + $0x60] sm:$0xff]
        %v552 = vld [vmem:[#allocation2 + $0x68] sm:$0xff]
        %v553 = vld [vmem:[#allocation2 + $0x70] sm:$0xff]
        %v554 = vld [vmem:[#allocation2 + $0x78] sm:$0xff]
        %v555 = vld [vmem:[%s301] sm:$0xf]
        %v556 = vld [vmem:[%s301 + $0x4] sm:$0xf]
        %v557 = vld [vmem:[%s301 + $0x8] sm:$0xf]
        %v558 = vld [vmem:[%s301 + $0xc] sm:$0xf]
        %v559 = vld [vmem:[%s301 + $0x10] sm:$0xf]
        %v560 = vld [vmem:[%s301 + $0x14] sm:$0xf]
        %v561 = vld [vmem:[%s301 + $0x18] sm:$0xf]
        %v562 = vld [vmem:[%s301 + $0x1c] sm:$0xf]
        %v563 = vld [vmem:[%s301 + $0x20] sm:$0xf]
        %v564 = vld [vmem:[%s301 + $0x24] sm:$0xf]
        %v565 = vld [vmem:[%s301 + $0x28] sm:$0xf]
        %v566 = vld [vmem:[%s301 + $0x2c] sm:$0xf]
        %v567 = vld [vmem:[%s301 + $0x30] sm:$0xf]
        %v568 = vld [vmem:[%s301 + $0x34] sm:$0xf]
        %v569 = vld [vmem:[%s301 + $0x38] sm:$0xf]
        %v570 = vld [vmem:[%s301 + $0x3c] sm:$0xf]
        %v571 = vpack.c.bf16 %v502, %v500
        %v572 = vpack.c.bf16 %v507, %v505
        %v573 = vpack.c.bf16 %v512, %v510
        %v574 = vpack.c.bf16 %v517, %v515
        %v575 = vpack.c.bf16 %v522, %v520
        %v576 = vpack.c.bf16 %v527, %v525
        %v577 = vpack.c.bf16 %v532, %v530
        %v578 = vpack.c.bf16 %v537, %v535
        %v595 = vunpack.c.l.b16 %v555
        %v596 = vunpack.c.l.b16 %v556
        %v597 = vunpack.c.l.b16 %v557
        %v598 = vunpack.c.l.b16 %v558
        %v599 = vunpack.c.l.b16 %v559
        %v600 = vunpack.c.l.b16 %v560
        %v601 = vunpack.c.l.b16 %v561
        %v602 = vunpack.c.l.b16 %v562
        %v603 = vunpack.c.l.b16 %v563
        %v604 = vunpack.c.l.b16 %v564
        %v605 = vunpack.c.l.b16 %v565
        %v606 = vunpack.c.l.b16 %v566
        %v607 = vunpack.c.l.b16 %v567
        %v608 = vunpack.c.l.b16 %v568
        %v609 = vunpack.c.l.b16 %v569
        %v610 = vunpack.c.l.b16 %v570
        %v611 = vpack.c.b16 %v596, %v595
        %v612 = vpack.c.b16 %v598, %v597
        %v613 = vpack.c.b16 %v600, %v599
        %v614 = vpack.c.b16 %v602, %v601
        %v615 = vpack.c.b16 %v604, %v603
        %v616 = vpack.c.b16 %v606, %v605
        %v617 = vpack.c.b16 %v608, %v607
        %v618 = vpack.c.b16 %v610, %v609
        %627 = vmatpush.bf16.msra.mxu0 %v578
        %628 = vmatpush.bf16.msra.mxu0 %v577
        %629 = vmatpush.bf16.msra.mxu0 %v576
        %630 = vmatpush.bf16.msra.mxu0 %v575
        %631 = vmatpush.bf16.msra.mxu0 %v574
        %632 = vmatpush.bf16.msra.mxu0 %v573
        %633 = vmatpush.bf16.msra.mxu0 %v572
        %634 = vmatpush.bf16.msra.mxu0 %v571
        %635 = vmatmul.bf16.gmra.mxu0 %v611
        %v636 = vpop.f32.mrf.mxu0
        %v637 = vadd.f32 0.0, %v636
        %v638 = vpop.f32.mrf.mxu0
        %v639 = vadd.f32 0.0, %v638
        %640 = vmatmul.bf16.gmra.mxu0 %v612
        %v641 = vpop.f32.mrf.mxu0
        %v642 = vadd.f32 0.0, %v641
        %v643 = vpop.f32.mrf.mxu0
        %v644 = vadd.f32 0.0, %v643
        %645 = vmatmul.bf16.gmra.mxu0 %v613
        %v646 = vpop.f32.mrf.mxu0
        %v647 = vadd.f32 0.0, %v646
        %v648 = vpop.f32.mrf.mxu0
        %v649 = vadd.f32 0.0, %v648
        %650 = vmatmul.bf16.gmra.mxu0 %v614
        %v651 = vpop.f32.mrf.mxu0
        %v652 = vadd.f32 0.0, %v651
        %v653 = vpop.f32.mrf.mxu0
        %v654 = vadd.f32 0.0, %v653
        %655 = vmatmul.bf16.gmra.mxu0 %v615
        %v656 = vpop.f32.mrf.mxu0
        %v657 = vadd.f32 0.0, %v656
        %v658 = vpop.f32.mrf.mxu0
        %v659 = vadd.f32 0.0, %v658
        %660 = vmatmul.bf16.gmra.mxu0 %v616
        %v661 = vpop.f32.mrf.mxu0
        %v662 = vadd.f32 0.0, %v661
        %v663 = vpop.f32.mrf.mxu0
        %v664 = vadd.f32 0.0, %v663
        %665 = vmatmul.bf16.gmra.mxu0 %v617
        %v666 = vpop.f32.mrf.mxu0
        %v667 = vadd.f32 0.0, %v666
        %v668 = vpop.f32.mrf.mxu0
        %v669 = vadd.f32 0.0, %v668
        %670 = vmatmul.bf16.gmra.mxu0 %v618
        %v671 = vpop.f32.mrf.mxu0
        %v672 = vadd.f32 0.0, %v671
        %v673 = vpop.f32.mrf.mxu0
        %v674 = vadd.f32 0.0, %v673
        %675 = vdwg.mxu0
        %v676 = vadd.f32 %v539, %v637
        %v677 = vadd.f32 %v540, %v639
        %v678 = vadd.f32 %v541, %v642
        %v679 = vadd.f32 %v542, %v644
        %v680 = vadd.f32 %v543, %v647
        %v681 = vadd.f32 %v544, %v649
        %v682 = vadd.f32 %v545, %v652
        %v683 = vadd.f32 %v546, %v654
        %v684 = vadd.f32 %v547, %v657
        %v685 = vadd.f32 %v548, %v659
        %v686 = vadd.f32 %v549, %v662
        %v687 = vadd.f32 %v550, %v664
        %v688 = vadd.f32 %v551, %v667
        %v689 = vadd.f32 %v552, %v669
        %v690 = vadd.f32 %v553, %v672
        %v691 = vadd.f32 %v554, %v674
        %692 = vst [vmem:[#allocation2] sm:$0xff] %v676
        %693 = vst [vmem:[#allocation2 + $0x8] sm:$0xff] %v677
        %694 = vst [vmem:[#allocation2 + $0x10] sm:$0xff] %v678
        %695 = vst [vmem:[#allocation2 + $0x18] sm:$0xff] %v679
        %696 = vst [vmem:[#allocation2 + $0x20] sm:$0xff] %v680
        %697 = vst [vmem:[#allocation2 + $0x28] sm:$0xff] %v681
        %698 = vst [vmem:[#allocation2 + $0x30] sm:$0xff] %v682
        %699 = vst [vmem:[#allocation2 + $0x38] sm:$0xff] %v683
        %700 = vst [vmem:[#allocation2 + $0x40] sm:$0xff] %v684
        %701 = vst [vmem:[#allocation2 + $0x48] sm:$0xff] %v685
        %702 = vst [vmem:[#allocation2 + $0x50] sm:$0xff] %v686
        %703 = vst [vmem:[#allocation2 + $0x58] sm:$0xff] %v687
        %704 = vst [vmem:[#allocation2 + $0x60] sm:$0xff] %v688
        %705 = vst [vmem:[#allocation2 + $0x68] sm:$0xff] %v689
        %706 = vst [vmem:[#allocation2 + $0x70] sm:$0xff] %v690
        %707 = vst [vmem:[#allocation2 + $0x78] sm:$0xff] %v691
        %p708 = scmp.eq.s32.totalorder %s20, 1
        // Predicated region
        $region82: #{_gcn_forward_impl.5} parent=72 // pred_check
          %p709 = pneg %p708
        $region83: #{_gcn_forward_impl.5} parent=72 // pred_check_branch
          %711 = sbr.rel (%p709) target = $region85
        $region84: #{_gcn_forward_impl.5} parent=72 // pred_region
          %v712 = vld [vmem:[#allocation2] sm:$0xff]
          %v713 = vld [vmem:[#allocation2 + $0x8] sm:$0xff]
          %v714 = vld [vmem:[#allocation2 + $0x10] sm:$0xff]
          %v715 = vld [vmem:[#allocation2 + $0x18] sm:$0xff]
          %v716 = vld [vmem:[#allocation2 + $0x20] sm:$0xff]
          %v717 = vld [vmem:[#allocation2 + $0x28] sm:$0xff]
          %v718 = vld [vmem:[#allocation2 + $0x30] sm:$0xff]
          %v719 = vld [vmem:[#allocation2 + $0x38] sm:$0xff]
          %v720 = vld [vmem:[#allocation2 + $0x40] sm:$0xff]
          %v721 = vld [vmem:[#allocation2 + $0x48] sm:$0xff]
          %v722 = vld [vmem:[#allocation2 + $0x50] sm:$0xff]
          %v723 = vld [vmem:[#allocation2 + $0x58] sm:$0xff]
          %v724 = vld [vmem:[#allocation2 + $0x60] sm:$0xff]
          %v725 = vld [vmem:[#allocation2 + $0x68] sm:$0xff]
          %v726 = vld [vmem:[#allocation2 + $0x70] sm:$0xff]
          %v727 = vld [vmem:[#allocation2 + $0x78] sm:$0xff]
          %v728 = vld [vmem:[%s3] sm:$0x1]
          %v730 = vperm.slane %v728, 0
          %v732 = vadd.f32 %v712, %v730
          %v733 = vadd.f32 %v713, %v730
          %v734 = vadd.f32 %v714, %v730
          %v735 = vadd.f32 %v715, %v730
          %v736 = vadd.f32 %v716, %v730
          %v737 = vadd.f32 %v717, %v730
          %v738 = vadd.f32 %v718, %v730
          %v739 = vadd.f32 %v719, %v730
          %v740 = vadd.f32 %v720, %v730
          %v741 = vadd.f32 %v721, %v730
          %v742 = vadd.f32 %v722, %v730
          %v743 = vadd.f32 %v723, %v730
          %v744 = vadd.f32 %v724, %v730
          %v745 = vadd.f32 %v725, %v730
          %v746 = vadd.f32 %v726, %v730
          %v747 = vadd.f32 %v727, %v730
          %748 = vst [vmem:[%s340] sm:$0xff] %v732
          %749 = vst [vmem:[%s340 + $0x8] sm:$0xff] %v733
          %750 = vst [vmem:[%s340 + $0x10] sm:$0xff] %v734
          %751 = vst [vmem:[%s340 + $0x18] sm:$0xff] %v735
          %752 = vst [vmem:[%s340 + $0x20] sm:$0xff] %v736
          %753 = vst [vmem:[%s340 + $0x28] sm:$0xff] %v737
          %754 = vst [vmem:[%s340 + $0x30] sm:$0xff] %v738
          %755 = vst [vmem:[%s340 + $0x38] sm:$0xff] %v739
          %756 = vst [vmem:[%s340 + $0x40] sm:$0xff] %v740
          %757 = vst [vmem:[%s340 + $0x48] sm:$0xff] %v741
          %758 = vst [vmem:[%s340 + $0x50] sm:$0xff] %v742
          %759 = vst [vmem:[%s340 + $0x58] sm:$0xff] %v743
          %760 = vst [vmem:[%s340 + $0x60] sm:$0xff] %v744
          %761 = vst [vmem:[%s340 + $0x68] sm:$0xff] %v745
          %762 = vst [vmem:[%s340 + $0x70] sm:$0xff] %v746
          %763 = vst [vmem:[%s340 + $0x78] sm:$0xff] %v747
        $region85: #{_gcn_forward_impl.5} parent=72 // pred_fallthru
          _
        %s764 = smul.u32 16, %s19
        %p765 = scmp.lt.s32.totalorder %s764, 31
        %s766 = scalar_select %p765, %s764, 31
        %s767 = smul.addr %s766, 8
        %s768 = scalar_lea.vmem %s4, %s767
        // Predicated region
        $region86: #{_gcn_forward_impl.5} parent=72 // pred_check
          %p769 = pneg %p141
        $region87: #{_gcn_forward_impl.5} parent=72 // pred_check_branch
          %771 = sbr.rel (%p769) target = $region89
        $region88: #{_gcn_forward_impl.5} parent=72 // pred_region
          %s772 = smul.u32 16, %s19
        $region89: #{_gcn_forward_impl.5} parent=72 // pred_fallthru
          _
      $region73: #{_gcn_forward_impl.5} parent=5 // pred_fallthru
        _
      %p773 = scmp.le.s32.totalorder 2, %s10
      // Predicated region
      $region90: #{_gcn_forward_impl.5} parent=5 // pred_check
        %p774 = pneg %p773
      $region91: #{_gcn_forward_impl.5} parent=5 // pred_check_branch
        %776 = sbr.rel (%p774) target = $region93
      $region92: #{_gcn_forward_impl.5} parent=5 // pred_region
        %s777 = ssub.s32 %s10, 2
        // Predicated region
        $region94: #{_gcn_forward_impl.5} parent=92 // pred_check
          %p778 = pneg %p147
        $region95: #{_gcn_forward_impl.5} parent=92 // pred_check_branch
          %780 = sbr.rel (%p778) target = $region97
        $region96: #{_gcn_forward_impl.5} parent=92 // pred_region
          %s781 = smul.u32 16, %s21
          %p782 = scmp.lt.s32.totalorder %s781, 31
          %s783 = scalar_select %p782, %s781, 31
          %s784 = smul.addr %s783, 8
          %s785 = scalar_lea.vmem %s4, %s784
        $region97: #{_gcn_forward_impl.5} parent=92 // pred_fallthru
          _
      $region93: #{_gcn_forward_impl.5} parent=5 // pred_fallthru
        _
    $region6: #{_gcn_forward_impl.5} parent=1 // loop_footer
      %s14 = sadd.s32 1, %s10
    $region7: #{_gcn_forward_impl.5} parent=1 // loop_footer_branch
      %9 = sbr.rel target = $region3
    $region8: #{_gcn_forward_impl.5} parent=1 // loop_exit
      _

// kernel: _gcn_forward_impl.3
$region0: #{_gcn_forward_impl.3}
  #allocation0 [shape = 'u32[]', space=smem, size = 0x4, offset = 0x4, fixed_abs, tag = 'smem constant byte address 0x4 - core index']
  #allocation1 [shape = 'u32[72,128]{1,0:T(1,128)}', space=vmem, size = 0x9000, scoped, tag = 'internal scratch']
  #allocation2 [shape = 'f32[128,128]{1,0:T(8,128)}', space=vmem, size = 0x10000, scoped, tag = 'scratch operand']
  %s0 = inlined_call_operand.vmem [shape: bf16[256,256], index: 0, kind: input, shape index: {}]
  %s1 = inlined_call_operand.vmem [shape: bf16[256,128], index: 1, kind: input, shape index: {}]
  %s2 = inlined_call_operand.vmem [shape: bf16[128,128], index: 2, kind: input, shape index: {}]
  %s3 = inlined_call_operand.vmem [shape: f32[1,128], index: 3, kind: input, shape index: {}]
  %s4 = inlined_call_operand.vmem [shape: bf16[256,128], index: 4, kind: output, shape index: {}]
  %s5 = sld [smem:[#allocation0]]
  $region98: #{_gcn_forward_impl.3} parent=0
    _
  %s7 = ssub.s32 1, %s5
  %s8 = scalar_select 0, %s7, %s5
  $region1: #{_gcn_forward_impl.3} parent=0
    #allocation3 [shape = 'u8[65536]{0}', space=vmem, size = 0x10000, scoped, tag = 'input window, operand 0']
    loop: start=0, step=1, limit=6
    $region2: #{_gcn_forward_impl.3} parent=1 // loop_pre_header
      _
    $region3: #{_gcn_forward_impl.3} parent=1 // loop_header
      %s10 = sphi 0, %s14
      %p11 = scmp.ge.s32.totalorder %s10, 6
      %s17 = sphi 0, %s29
      %s18 = sphi 0, %s25
      %s19 = sphi 0, %s17
      %s20 = sphi 0, %s18
      %s21 = sphi 0, %s19
      %s22 = sphi 0, %s20
      %s34 = sphi 0, %s36
      %s37 = sphi 0, %s34
      %s38 = sphi 0, %s37
      %s54 = sphi 0, %s38
      %s60 = sphi 0, %s62
      %s63 = sphi 0, %s60
      %s64 = sphi 0, %s63
      %s80 = sphi 0, %s64
      %s84 = sphi 0, %s84
      %s86 = sphi 0, %s84
      %s87 = sphi 0, %s86
      %s101 = sphi 0, %s87
      %s105 = sphi 0, %s105
      %s107 = sphi 0, %s105
      %s108 = sphi 0, %s107
      %s122 = sphi 0, %s108
      %s128 = sphi 0, %s130
      %s131 = sphi 0, %s128
      %s132 = sphi 0, %s131
      %s148 = sphi 0, %s132
    $region4: #{_gcn_forward_impl.3} parent=1 // loop_header_branch
      %13 = sbr.rel (%p11) target = $region8
    $region5: #{_gcn_forward_impl.3} parent=1 // loop_body
      %s15 = ssub.s32 %s10, 1
      %s16 = ssub.s32 %s10, 2
      %s23 = sadd.s32 1, %s18
      %p24 = scmp.ge.s32.totalorder %s23, 2
      %s25 = scalar_select %p24, 0, %s23
      %s26 = sadd.s32 1, %s17
      %s27 = scalar_select %p24, %s26, %s17
      %p28 = scmp.ge.s32.totalorder %s27, 2
      %s29 = scalar_select %p28, 0, %s27
      %s30 = ssub.s32 %s17, %s29
      %s31 = ssub.s32 %s18, %s25
      %s32 = sor.u32 %s30, %s31
      %p33 = scmp.eq.s32.totalorder %s32, 0
      %s35 = sadd.s32 %s34, 1
      %s36 = scalar_select %p33, %s34, %s35
      %p39 = pneg %p33
      %p40 = scmp.eq.s32.totalorder %s10, 3
      %p41 = por %p39, %p40
      %p42 = scmp.ne.s32.totalorder %s34, %s37
      %p43 = scmp.eq.s32.totalorder %s10, 0
      %p44 = por %p42, %p43
      %p45 = scmp.ne.s32.totalorder %s34, %s37
      %p46 = scmp.eq.s32.totalorder %s15, 3
      %p47 = por %p45, %p46
      %p48 = scmp.ne.s32.totalorder %s37, %s38
      %p49 = scmp.eq.s32.totalorder %s15, 0
      %p50 = por %p48, %p49
      %p51 = scmp.ne.s32.totalorder %s37, %s38
      %p52 = scmp.eq.s32.totalorder %s16, 3
      %p53 = por %p51, %p52
      %p55 = scmp.ne.s32.totalorder %s38, %s54
      %p56 = scmp.eq.s32.totalorder %s16, 0
      %p57 = por %p55, %p56
      %s58 = ssub.s32 %s18, %s25
      %p59 = scmp.eq.s32.totalorder %s58, 0
      %s61 = sadd.s32 %s60, 1
      %s62 = scalar_select %p59, %s60, %s61
      %p65 = pneg %p59
      %p66 = scmp.eq.s32.totalorder %s10, 3
      %p67 = por %p65, %p66
      %p68 = scmp.ne.s32.totalorder %s60, %s63
      %p69 = scmp.eq.s32.totalorder %s10, 0
      %p70 = por %p68, %p69
      %p71 = scmp.ne.s32.totalorder %s60, %s63
      %p72 = scmp.eq.s32.totalorder %s15, 3
      %p73 = por %p71, %p72
      %p74 = scmp.ne.s32.totalorder %s63, %s64
      %p75 = scmp.eq.s32.totalorder %s15, 0
      %p76 = por %p74, %p75
      %p77 = scmp.ne.s32.totalorder %s63, %s64
      %p78 = scmp.eq.s32.totalorder %s16, 3
      %p79 = por %p77, %p78
      %p81 = scmp.ne.s32.totalorder %s64, %s80
      %p82 = scmp.eq.s32.totalorder %s16, 0
      %p83 = por %p81, %p82
      %s85 = sadd.s32 %s84, 1
      %p88 = scmp.eq.s32.totalorder %s10, 3
      %p89 = scmp.ne.s32.totalorder %s84, %s86
      %p90 = scmp.eq.s32.totalorder %s10, 0
      %p91 = por %p89, %p90
      %p92 = scmp.ne.s32.totalorder %s84, %s86
      %p93 = scmp.eq.s32.totalorder %s15, 3
      %p94 = por %p92, %p93
      %p95 = scmp.ne.s32.totalorder %s86, %s87
      %p96 = scmp.eq.s32.totalorder %s15, 0
      %p97 = por %p95, %p96
      %p98 = scmp.ne.s32.totalorder %s86, %s87
      %p99 = scmp.eq.s32.totalorder %s16, 3
      %p100 = por %p98, %p99
      %p102 = scmp.ne.s32.totalorder %s87, %s101
      %p103 = scmp.eq.s32.totalorder %s16, 0
      %p104 = por %p102, %p103
      %s106 = sadd.s32 %s105, 1
      %p109 = scmp.eq.s32.totalorder %s10, 3
      %p110 = scmp.ne.s32.totalorder %s105, %s107
      %p111 = scmp.eq.s32.totalorder %s10, 0
      %p112 = por %p110, %p111
      %p113 = scmp.ne.s32.totalorder %s105, %s107
      %p114 = scmp.eq.s32.totalorder %s15, 3
      %p115 = por %p113, %p114
      %p116 = scmp.ne.s32.totalorder %s107, %s108
      %p117 = scmp.eq.s32.totalorder %s15, 0
      %p118 = por %p116, %p117
      %p119 = scmp.ne.s32.totalorder %s107, %s108
      %p120 = scmp.eq.s32.totalorder %s16, 3
      %p121 = por %p119, %p120
      %p123 = scmp.ne.s32.totalorder %s108, %s122
      %p124 = scmp.eq.s32.totalorder %s16, 0
      %p125 = por %p123, %p124
      %s126 = ssub.s32 %s17, %s29
      %p127 = scmp.eq.s32.totalorder %s126, 0
      %s129 = sadd.s32 %s128, 1
      %s130 = scalar_select %p127, %s128, %s129
      %p133 = pneg %p127
      %p134 = scmp.eq.s32.totalorder %s10, 3
      %p135 = por %p133, %p134
      %p136 = scmp.ne.s32.totalorder %s128, %s131
      %p137 = scmp.eq.s32.totalorder %s10, 0
      %p138 = por %p136, %p137
      %p139 = scmp.ne.s32.totalorder %s128, %s131
      %p140 = scmp.eq.s32.totalorder %s15, 3
      %p141 = por %p139, %p140
      %p142 = scmp.ne.s32.totalorder %s131, %s132
      %p143 = scmp.eq.s32.totalorder %s15, 0
      %p144 = por %p142, %p143
      %p145 = scmp.ne.s32.totalorder %s131, %s132
      %p146 = scmp.eq.s32.totalorder %s16, 3
      %p147 = por %p145, %p146
      %p149 = scmp.ne.s32.totalorder %s132, %s148
      %p150 = scmp.eq.s32.totalorder %s16, 0
      %p151 = por %p149, %p150
      %p152 = scmp.le.s32.totalorder 1, %s10
      %p153 = scmp.lt.s32.totalorder %s10, 5
      %p154 = pnand %p152, %p153
      %p155 = pneg %p154
      // Predicated region
      $region9: #{_gcn_forward_impl.3} parent=5 // pred_check
        _
      $region10: #{_gcn_forward_impl.3} parent=5 // pred_check_branch
        %157 = sbr.rel (%p154) target = $region12
      $region11: #{_gcn_forward_impl.3} parent=5 // pred_region
        %s158 = ssub.s32 %s10, 1
        // Predicated region
        $region13: #{_gcn_forward_impl.3} parent=11 // pred_check
          %p159 = pneg %p97
        $region14: #{_gcn_forward_impl.3} parent=11 // pred_check_branch
          %161 = sbr.rel (%p159) target = $region16
        $region15: #{_gcn_forward_impl.3} parent=11 // pred_region
          _
        $region16: #{_gcn_forward_impl.3} parent=11 // pred_fallthru
          _
        // Predicated region
        $region17: #{_gcn_forward_impl.3} parent=11 // pred_check
          %p162 = pneg %p118
        $region18: #{_gcn_forward_impl.3} parent=11 // pred_check_branch
          %164 = sbr.rel (%p162) target = $region20
        $region19: #{_gcn_forward_impl.3} parent=11 // pred_region
          _
        $region20: #{_gcn_forward_impl.3} parent=11 // pred_fallthru
          _
      $region12: #{_gcn_forward_impl.3} parent=5 // pred_fallthru
        _
      %p165 = scmp.lt.s32.totalorder %s10, 4
      // Predicated region
      $region21: #{_gcn_forward_impl.3} parent=5 // pred_check
        %p166 = pneg %p165
      $region22: #{_gcn_forward_impl.3} parent=5 // pred_check_branch
        %168 = sbr.rel (%p166) target = $region24
      $region23: #{_gcn_forward_impl.3} parent=5 // pred_region
        // Predicated region
        $region25: #{_gcn_forward_impl.3} parent=23 // pred_check
          %p169 = pneg %p44
        $region26: #{_gcn_forward_impl.3} parent=23 // pred_check_branch
          %171 = sbr.rel (%p169) target = $region28
        $region27: #{_gcn_forward_impl.3} parent=23 // pred_region
          %s172 = sand.u32 %s34, 1
          %s173 = sand.u32 %s34, 1
          %s174 = smul.addr %s173, 64
          %s175 = scalar_lea.vmem [#allocation3], %s174
          %s176 = smul.u32 16, %s17
          %s177 = smul.addr %s176, 2
          %s178 = sadd.s32 %s18, %s177
          %s179 = smul.addr %s178, 4
          %s180 = scalar_lea.vmem %s0, %s179
          // Predicated region
          $region29: #{_gcn_forward_impl.3} parent=27 // pred_check
            _
          $region30: #{_gcn_forward_impl.3} parent=27 // pred_check_branch
            %182 = sbr.rel (0) target = $region32
          $region31: #{_gcn_forward_impl.3} parent=27 // pred_region
            // Predicated region
            $region33: #{_gcn_forward_impl.3} parent=31 // pred_check
              _
            $region34: #{_gcn_forward_impl.3} parent=31 // pred_check_branch
              %184 = sbr.rel target = $region36
            $region35: #{_gcn_forward_impl.3} parent=31 // pred_region
              // Predicated region
              $region48: #{_gcn_forward_impl.3} parent=35 // pred_check
                _
              $region49: #{_gcn_forward_impl.3} parent=35 // pred_check_branch
                %230 = sbr.rel (0) target = $region51
              $region50: #{_gcn_forward_impl.3} parent=35 // pred_region
                loop: start=0, step=1, limit=1
                $region52: #{_gcn_forward_impl.3} parent=50 // loop_pre_header
                  _
                $region53: #{_gcn_forward_impl.3} parent=50 // loop_header
                  %s232 = sphi 0, %s236
                  %p233 = scmp.ge.s32.totalorder %s232, 1
                  %s237 = sphi %s180, %s180
                  %s238 = sphi %s175, %s175
                $region54: #{_gcn_forward_impl.3} parent=50 // loop_header_branch
                  %235 = sbr.rel (%p233) target = $region58
                $region55: #{_gcn_forward_impl.3} parent=50 // loop_body
                  _
                $region56: #{_gcn_forward_impl.3} parent=50 // loop_footer
                  %s236 = sadd.s32 1, %s232
                $region57: #{_gcn_forward_impl.3} parent=50 // loop_footer_branch
                  %231 = sbr.rel target = $region53
                $region58: #{_gcn_forward_impl.3} parent=50 // loop_exit
                  _
                %s240 = ssub.s32 16, 1
                loop: start=0, step=1, limit=1
                $region59: #{_gcn_forward_impl.3} parent=50 // loop_pre_header
                  _
                $region60: #{_gcn_forward_impl.3} parent=50 // loop_header
                  %s242 = sphi 0, %s246
                  %p243 = scmp.ge.s32.totalorder %s242, 1
                  %s247 = sphi %s180, %s180
                  %s248 = sphi %s175, %s175
                $region61: #{_gcn_forward_impl.3} parent=50 // loop_header_branch
                  %245 = sbr.rel (%p243) target = $region65
                $region62: #{_gcn_forward_impl.3} parent=50 // loop_body
                  %v249 = vld [vmem:[%s247] sm:%s240]
                  %250 = vst [vmem:[%s248] sm:%s240] %v249
                  %v251 = vld [vmem:[%s247 + $0x8] sm:%s240]
                  %252 = vst [vmem:[%s248 + $0x4] sm:%s240] %v251
                  %v253 = vld [vmem:[%s247 + $0x10] sm:%s240]
                  %254 = vst [vmem:[%s248 + $0x8] sm:%s240] %v253
                  %v255 = vld [vmem:[%s247 + $0x18] sm:%s240]
                  %256 = vst [vmem:[%s248 + $0xc] sm:%s240] %v255
                  %v257 = vld [vmem:[%s247 + $0x20] sm:%s240]
                  %258 = vst [vmem:[%s248 + $0x10] sm:%s240] %v257
                  %v259 = vld [vmem:[%s247 + $0x28] sm:%s240]
                  %260 = vst [vmem:[%s248 + $0x14] sm:%s240] %v259
                  %v261 = vld [vmem:[%s247 + $0x30] sm:%s240]
                  %262 = vst [vmem:[%s248 + $0x18] sm:%s240] %v261
                  %v263 = vld [vmem:[%s247 + $0x38] sm:%s240]
                  %264 = vst [vmem:[%s248 + $0x1c] sm:%s240] %v263
                  %v265 = vld [vmem:[%s247 + $0x40] sm:%s240]
                  %266 = vst [vmem:[%s248 + $0x20] sm:%s240] %v265
                  %v267 = vld [vmem:[%s247 + $0x48] sm:%s240]
                  %268 = vst [vmem:[%s248 + $0x24] sm:%s240] %v267
                  %v269 = vld [vmem:[%s247 + $0x50] sm:%s240]
                  %270 = vst [vmem:[%s248 + $0x28] sm:%s240] %v269
                  %v271 = vld [vmem:[%s247 + $0x58] sm:%s240]
                  %272 = vst [vmem:[%s248 + $0x2c] sm:%s240] %v271
                  %v273 = vld [vmem:[%s247 + $0x60] sm:%s240]
                  %274 = vst [vmem:[%s248 + $0x30] sm:%s240] %v273
                  %v275 = vld [vmem:[%s247 + $0x68] sm:%s240]
                  %276 = vst [vmem:[%s248 + $0x34] sm:%s240] %v275
                  %v277 = vld [vmem:[%s247 + $0x70] sm:%s240]
                  %278 = vst [vmem:[%s248 + $0x38] sm:%s240] %v277
                  %v279 = vld [vmem:[%s247 + $0x78] sm:%s240]
                  %280 = vst [vmem:[%s248 + $0x3c] sm:%s240] %v279
                $region63: #{_gcn_forward_impl.3} parent=50 // loop_footer
                  %s246 = sadd.s32 1, %s242
                $region64: #{_gcn_forward_impl.3} parent=50 // loop_footer_branch
                  %241 = sbr.rel target = $region60
                $region65: #{_gcn_forward_impl.3} parent=50 // loop_exit
                  _
              $region51: #{_gcn_forward_impl.3} parent=35 // pred_fallthru
                _
            $region36: #{_gcn_forward_impl.3} parent=31 // pred_fallthru
              _
            // Predicated region
            $region37: #{_gcn_forward_impl.3} parent=31 // pred_check
              _
            $region38: #{_gcn_forward_impl.3} parent=31 // pred_check_branch
              %186 = sbr.rel (0) target = $region40
            $region39: #{_gcn_forward_impl.3} parent=31 // pred_region
              %s188 = ssub.s32 16, 1
              loop: start=0, step=1, limit=1
              $region41: #{_gcn_forward_impl.3} parent=39 // loop_pre_header
                _
              $region42: #{_gcn_forward_impl.3} parent=39 // loop_header
                %s190 = sphi 0, %s194
                %p191 = scmp.ge.s32.totalorder %s190, 1
                %s195 = sphi %s180, %s180
                %s196 = sphi %s175, %s175
              $region43: #{_gcn_forward_impl.3} parent=39 // loop_header_branch
                %193 = sbr.rel (%p191) target = $region47
              $region44: #{_gcn_forward_impl.3} parent=39 // loop_body
                %v197 = vld [vmem:[%s195] sm:%s188]
                %198 = vst [vmem:[%s196] sm:%s188] %v197
                %v199 = vld [vmem:[%s195 + $0x8] sm:%s188]
                %200 = vst [vmem:[%s196 + $0x4] sm:%s188] %v199
                %v201 = vld [vmem:[%s195 + $0x10] sm:%s188]
                %202 = vst [vmem:[%s196 + $0x8] sm:%s188] %v201
                %v203 = vld [vmem:[%s195 + $0x18] sm:%s188]
                %204 = vst [vmem:[%s196 + $0xc] sm:%s188] %v203
                %v205 = vld [vmem:[%s195 + $0x20] sm:%s188]
                %206 = vst [vmem:[%s196 + $0x10] sm:%s188] %v205
                %v207 = vld [vmem:[%s195 + $0x28] sm:%s188]
                %208 = vst [vmem:[%s196 + $0x14] sm:%s188] %v207
                %v209 = vld [vmem:[%s195 + $0x30] sm:%s188]
                %210 = vst [vmem:[%s196 + $0x18] sm:%s188] %v209
                %v211 = vld [vmem:[%s195 + $0x38] sm:%s188]
                %212 = vst [vmem:[%s196 + $0x1c] sm:%s188] %v211
                %v213 = vld [vmem:[%s195 + $0x40] sm:%s188]
                %214 = vst [vmem:[%s196 + $0x20] sm:%s188] %v213
                %v215 = vld [vmem:[%s195 + $0x48] sm:%s188]
                %216 = vst [vmem:[%s196 + $0x24] sm:%s188] %v215
                %v217 = vld [vmem:[%s195 + $0x50] sm:%s188]
                %218 = vst [vmem:[%s196 + $0x28] sm:%s188] %v217
                %v219 = vld [vmem:[%s195 + $0x58] sm:%s188]
                %220 = vst [vmem:[%s196 + $0x2c] sm:%s188] %v219
                %v221 = vld [vmem:[%s195 + $0x60] sm:%s188]
                %222 = vst [vmem:[%s196 + $0x30] sm:%s188] %v221
                %v223 = vld [vmem:[%s195 + $0x68] sm:%s188]
                %224 = vst [vmem:[%s196 + $0x34] sm:%s188] %v223
                %v225 = vld [vmem:[%s195 + $0x70] sm:%s188]
                %226 = vst [vmem:[%s196 + $0x38] sm:%s188] %v225
                %v227 = vld [vmem:[%s195 + $0x78] sm:%s188]
                %228 = vst [vmem:[%s196 + $0x3c] sm:%s188] %v227
              $region45: #{_gcn_forward_impl.3} parent=39 // loop_footer
                %s194 = sadd.s32 1, %s190
              $region46: #{_gcn_forward_impl.3} parent=39 // loop_footer_branch
                %189 = sbr.rel target = $region42
              $region47: #{_gcn_forward_impl.3} parent=39 // loop_exit
                _
            $region40: #{_gcn_forward_impl.3} parent=31 // pred_fallthru
              _
          $region32: #{_gcn_forward_impl.3} parent=27 // pred_fallthru
            _
          %281 = vnop
        $region28: #{_gcn_forward_impl.3} parent=23 // pred_fallthru
          _
        // Predicated region
        $region66: #{_gcn_forward_impl.3} parent=23 // pred_check
          %p282 = pneg %p70
        $region67: #{_gcn_forward_impl.3} parent=23 // pred_check_branch
          %284 = sbr.rel (%p282) target = $region69
        $region68: #{_gcn_forward_impl.3} parent=23 // pred_region
          %s285 = smul.u32 16, %s18
          %p286 = scmp.lt.s32.totalorder %s285, 31
          %s287 = scalar_select %p286, %s285, 31
          %s288 = smul.addr %s287, 4
          %s289 = scalar_lea.vmem %s1, %s288
          %s290 = smul.u32 16, %s18
        $region69: #{_gcn_forward_impl.3} parent=23 // pred_fallthru
          _
      $region24: #{_gcn_forward_impl.3} parent=5 // pred_fallthru
        _
      %p291 = scmp.le.s32.totalorder 1, %s10
      %p292 = scmp.lt.s32.totalorder %s10, 5
      %p293 = pnand %p291, %p292
      %p294 = pneg %p293
      // Predicated region
      $region70: #{_gcn_forward_impl.3} parent=5 // pred_check
        _
      $region71: #{_gcn_forward_impl.3} parent=5 // pred_check_branch
        %296 = sbr.rel (%p293) target = $region73
      $region72: #{_gcn_forward_impl.3} parent=5 // pred_region
        %s297 = ssub.s32 %s10, 1
        %s298 = sand.u32 %s37, 1
        %s299 = sand.u32 %s37, 1
        %s300 = smul.addr %s299, 64
        %s301 = scalar_lea.vmem [#allocation3], %s300
        // Predicated region
        $region74: #{_gcn_forward_impl.3} parent=72 // pred_check
          %p302 = pneg %p50
        $region75: #{_gcn_forward_impl.3} parent=72 // pred_check_branch
          %304 = sbr.rel (%p302) target = $region77
        $region76: #{_gcn_forward_impl.3} parent=72 // pred_region
          _
        $region77: #{_gcn_forward_impl.3} parent=72 // pred_fallthru
          _
        %s305 = sand.u32 %s37, 1
        %s306 = sand.u32 %s37, 1
        %s307 = smul.addr %s306, 64
        %s308 = scalar_lea.vmem [#allocation3], %s307
        %p309 = pneg %p50
        %p310 = pneg %p47
        %s311 = smul.u32 16, %s20
        %p312 = scmp.lt.s32.totalorder %s311, 31
        %s313 = scalar_select %p312, %s311, 31
        %s314 = smul.addr %s313, 4
        %s315 = scalar_lea.vmem %s1, %s314
        %p316 = pneg %p76
        %p317 = pneg %p73
        %p318 = pneg %p97
        %p319 = pneg %p94
        %p320 = pneg %p118
        %p321 = pneg %p115
        %p322 = pneg %p144
        %p323 = pneg %p141
        %s324 = smul.u32 16, %s19
        %p325 = scmp.lt.s32.totalorder %s324, 31
        %s326 = scalar_select %p325, %s324, 31
        %s327 = smul.addr %s326, 4
        %s328 = scalar_lea.vmem %s4, %s327
        %s329 = smul.u32 16, %s19
        %s330 = smul.u32 16, %s20
        %p331 = scmp.lt.s32.totalorder %s330, 31
        %s332 = scalar_select %p331, %s330, 31
        %s333 = smul.addr %s332, 4
        %s334 = scalar_lea.vmem %s1, %s333
        %s335 = smul.u32 16, %s20
        %s336 = smul.u32 16, %s19
        %p337 = scmp.lt.s32.totalorder %s336, 31
        %s338 = scalar_select %p337, %s336, 31
        %s339 = smul.addr %s338, 4
        %s340 = scalar_lea.vmem %s4, %s339
        %s341 = smul.u32 16, %s19
        %p342 = scmp.eq.s32.totalorder %s20, 0
        // Predicated region
        $region78: #{_gcn_forward_impl.3} parent=72 // pred_check
          %p343 = pneg %p342
        $region79: #{_gcn_forward_impl.3} parent=72 // pred_check_branch
          %345 = sbr.rel (%p343) target = $region81
        $region80: #{_gcn_forward_impl.3} parent=72 // pred_region
          %346 = vst [vmem:[#allocation2] sm:$0xff] 0.0
          %347 = vst [vmem:[#allocation2 + $0x8] sm:$0xff] 0.0
          %348 = vst [vmem:[#allocation2 + $0x10] sm:$0xff] 0.0
          %349 = vst [vmem:[#allocation2 + $0x18] sm:$0xff] 0.0
          %350 = vst [vmem:[#allocation2 + $0x20] sm:$0xff] 0.0
          %351 = vst [vmem:[#allocation2 + $0x28] sm:$0xff] 0.0
          %352 = vst [vmem:[#allocation2 + $0x30] sm:$0xff] 0.0
          %353 = vst [vmem:[#allocation2 + $0x38] sm:$0xff] 0.0
          %354 = vst [vmem:[#allocation2 + $0x40] sm:$0xff] 0.0
          %355 = vst [vmem:[#allocation2 + $0x48] sm:$0xff] 0.0
          %356 = vst [vmem:[#allocation2 + $0x50] sm:$0xff] 0.0
          %357 = vst [vmem:[#allocation2 + $0x58] sm:$0xff] 0.0
          %358 = vst [vmem:[#allocation2 + $0x60] sm:$0xff] 0.0
          %359 = vst [vmem:[#allocation2 + $0x68] sm:$0xff] 0.0
          %360 = vst [vmem:[#allocation2 + $0x70] sm:$0xff] 0.0
          %361 = vst [vmem:[#allocation2 + $0x78] sm:$0xff] 0.0
        $region81: #{_gcn_forward_impl.3} parent=72 // pred_fallthru
          _
        %v362 = vld [vmem:[%s334] sm:$0xf]
        %v363 = vld [vmem:[%s334 + $0x4] sm:$0xf]
        %v364 = vld [vmem:[%s334 + $0x8] sm:$0xf]
        %v365 = vld [vmem:[%s334 + $0xc] sm:$0xf]
        %v366 = vld [vmem:[%s334 + $0x10] sm:$0xf]
        %v367 = vld [vmem:[%s334 + $0x14] sm:$0xf]
        %v368 = vld [vmem:[%s334 + $0x18] sm:$0xf]
        %v369 = vld [vmem:[%s334 + $0x1c] sm:$0xf]
        %v370 = vld [vmem:[%s334 + $0x20] sm:$0xf]
        %v371 = vld [vmem:[%s334 + $0x24] sm:$0xf]
        %v372 = vld [vmem:[%s334 + $0x28] sm:$0xf]
        %v373 = vld [vmem:[%s334 + $0x2c] sm:$0xf]
        %v374 = vld [vmem:[%s334 + $0x30] sm:$0xf]
        %v375 = vld [vmem:[%s334 + $0x34] sm:$0xf]
        %v376 = vld [vmem:[%s334 + $0x38] sm:$0xf]
        %v377 = vld [vmem:[%s334 + $0x3c] sm:$0xf]
        %v378 = vld [vmem:[%s2] sm:$0xf]
        %v379 = vld [vmem:[%s2 + $0x4] sm:$0xf]
        %v380 = vld [vmem:[%s2 + $0x8] sm:$0xf]
        %v381 = vld [vmem:[%s2 + $0xc] sm:$0xf]
        %v382 = vld [vmem:[%s2 + $0x10] sm:$0xf]
        %v383 = vld [vmem:[%s2 + $0x14] sm:$0xf]
        %v384 = vld [vmem:[%s2 + $0x18] sm:$0xf]
        %v385 = vld [vmem:[%s2 + $0x1c] sm:$0xf]
        %v386 = vld [vmem:[%s2 + $0x20] sm:$0xf]
        %v387 = vld [vmem:[%s2 + $0x24] sm:$0xf]
        %v388 = vld [vmem:[%s2 + $0x28] sm:$0xf]
        %v389 = vld [vmem:[%s2 + $0x2c] sm:$0xf]
        %v390 = vld [vmem:[%s2 + $0x30] sm:$0xf]
        %v391 = vld [vmem:[%s2 + $0x34] sm:$0xf]
        %v392 = vld [vmem:[%s2 + $0x38] sm:$0xf]
        %v393 = vld [vmem:[%s2 + $0x3c] sm:$0xf]
        %v410 = vunpack.c.l.b16 %v362
        %v411 = vunpack.c.l.b16 %v363
        %v412 = vunpack.c.l.b16 %v364
        %v413 = vunpack.c.l.b16 %v365
        %v414 = vunpack.c.l.b16 %v366
        %v415 = vunpack.c.l.b16 %v367
        %v416 = vunpack.c.l.b16 %v368
        %v417 = vunpack.c.l.b16 %v369
        %v418 = vunpack.c.l.b16 %v370
        %v419 = vunpack.c.l.b16 %v371
        %v420 = vunpack.c.l.b16 %v372
        %v421 = vunpack.c.l.b16 %v373
        %v422 = vunpack.c.l.b16 %v374
        %v423 = vunpack.c.l.b16 %v375
        %v424 = vunpack.c.l.b16 %v376
        %v425 = vunpack.c.l.b16 %v377
        %v426 = vpack.c.b16 %v411, %v410
        %v427 = vpack.c.b16 %v413, %v412
        %v428 = vpack.c.b16 %v415, %v414
        %v429 = vpack.c.b16 %v417, %v416
        %v430 = vpack.c.b16 %v419, %v418
        %v431 = vpack.c.b16 %v421, %v420
        %v432 = vpack.c.b16 %v423, %v422
        %v433 = vpack.c.b16 %v425, %v424
        %v458 = vunpack.c.l.b16 %v378
        %v459 = vunpack.c.l.b16 %v379
        %v460 = vunpack.c.l.b16 %v380
        %v461 = vunpack.c.l.b16 %v381
        %v462 = vunpack.c.l.b16 %v382
        %v463 = vunpack.c.l.b16 %v383
        %v464 = vunpack.c.l.b16 %v384
        %v465 = vunpack.c.l.b16 %v385
        %v466 = vunpack.c.l.b16 %v386
        %v467 = vunpack.c.l.b16 %v387
        %v468 = vunpack.c.l.b16 %v388
        %v469 = vunpack.c.l.b16 %v389
        %v470 = vunpack.c.l.b16 %v390
        %v471 = vunpack.c.l.b16 %v391
        %v472 = vunpack.c.l.b16 %v392
        %v473 = vunpack.c.l.b16 %v393
        %v474 = vpack.c.b16 %v459, %v458
        %v475 = vpack.c.b16 %v461, %v460
        %v476 = vpack.c.b16 %v463, %v462
        %v477 = vpack.c.b16 %v465, %v464
        %v478 = vpack.c.b16 %v467, %v466
        %v479 = vpack.c.b16 %v469, %v468
        %v480 = vpack.c.b16 %v471, %v470
        %v481 = vpack.c.b16 %v473, %v472
        %490 = vmatpush.bf16.msra.mxu0 %v481
        %491 = vmatpush.bf16.msra.mxu0 %v480
        %492 = vmatpush.bf16.msra.mxu0 %v479
        %493 = vmatpush.bf16.msra.mxu0 %v478
        %494 = vmatpush.bf16.msra.mxu0 %v477
        %495 = vmatpush.bf16.msra.mxu0 %v476
        %496 = vmatpush.bf16.msra.mxu0 %v475
        %497 = vmatpush.bf16.msra.mxu0 %v474
        %498 = vmatmul.bf16.gmra.mxu0 %v426
        %v499 = vpop.f32.mrf.mxu0
        %v500 = vadd.f32 0.0, %v499
        %v501 = vpop.f32.mrf.mxu0
        %v502 = vadd.f32 0.0, %v501
        %503 = vmatmul.bf16.gmra.mxu0 %v427
        %v504 = vpop.f32.mrf.mxu0
        %v505 = vadd.f32 0.0, %v504
        %v506 = vpop.f32.mrf.mxu0
        %v507 = vadd.f32 0.0, %v506
        %508 = vmatmul.bf16.gmra.mxu0 %v428
        %v509 = vpop.f32.mrf.mxu0
        %v510 = vadd.f32 0.0, %v509
        %v511 = vpop.f32.mrf.mxu0
        %v512 = vadd.f32 0.0, %v511
        %513 = vmatmul.bf16.gmra.mxu0 %v429
        %v514 = vpop.f32.mrf.mxu0
        %v515 = vadd.f32 0.0, %v514
        %v516 = vpop.f32.mrf.mxu0
        %v517 = vadd.f32 0.0, %v516
        %518 = vmatmul.bf16.gmra.mxu0 %v430
        %v519 = vpop.f32.mrf.mxu0
        %v520 = vadd.f32 0.0, %v519
        %v521 = vpop.f32.mrf.mxu0
        %v522 = vadd.f32 0.0, %v521
        %523 = vmatmul.bf16.gmra.mxu0 %v431
        %v524 = vpop.f32.mrf.mxu0
        %v525 = vadd.f32 0.0, %v524
        %v526 = vpop.f32.mrf.mxu0
        %v527 = vadd.f32 0.0, %v526
        %528 = vmatmul.bf16.gmra.mxu0 %v432
        %v529 = vpop.f32.mrf.mxu0
        %v530 = vadd.f32 0.0, %v529
        %v531 = vpop.f32.mrf.mxu0
        %v532 = vadd.f32 0.0, %v531
        %533 = vmatmul.bf16.gmra.mxu0 %v433
        %v534 = vpop.f32.mrf.mxu0
        %v535 = vadd.f32 0.0, %v534
        %v536 = vpop.f32.mrf.mxu0
        %v537 = vadd.f32 0.0, %v536
        %538 = vdwg.mxu0
        %v539 = vld [vmem:[#allocation2] sm:$0xff]
        %v540 = vld [vmem:[#allocation2 + $0x8] sm:$0xff]
        %v541 = vld [vmem:[#allocation2 + $0x10] sm:$0xff]
        %v542 = vld [vmem:[#allocation2 + $0x18] sm:$0xff]
        %v543 = vld [vmem:[#allocation2 + $0x20] sm:$0xff]
        %v544 = vld [vmem:[#allocation2 + $0x28] sm:$0xff]
        %v545 = vld [vmem:[#allocation2 + $0x30] sm:$0xff]
        %v546 = vld [vmem:[#allocation2 + $0x38] sm:$0xff]
        %v547 = vld [vmem:[#allocation2 + $0x40] sm:$0xff]
        %v548 = vld [vmem:[#allocation2 + $0x48] sm:$0xff]
        %v549 = vld [vmem:[#allocation2 + $0x50] sm:$0xff]
        %v550 = vld [vmem:[#allocation2 + $0x58] sm:$0xff]
        %v551 = vld [vmem:[#allocation2 + $0x60] sm:$0xff]
        %v552 = vld [vmem:[#allocation2 + $0x68] sm:$0xff]
        %v553 = vld [vmem:[#allocation2 + $0x70] sm:$0xff]
        %v554 = vld [vmem:[#allocation2 + $0x78] sm:$0xff]
        %v555 = vld [vmem:[%s301] sm:$0xf]
        %v556 = vld [vmem:[%s301 + $0x4] sm:$0xf]
        %v557 = vld [vmem:[%s301 + $0x8] sm:$0xf]
        %v558 = vld [vmem:[%s301 + $0xc] sm:$0xf]
        %v559 = vld [vmem:[%s301 + $0x10] sm:$0xf]
        %v560 = vld [vmem:[%s301 + $0x14] sm:$0xf]
        %v561 = vld [vmem:[%s301 + $0x18] sm:$0xf]
        %v562 = vld [vmem:[%s301 + $0x1c] sm:$0xf]
        %v563 = vld [vmem:[%s301 + $0x20] sm:$0xf]
        %v564 = vld [vmem:[%s301 + $0x24] sm:$0xf]
        %v565 = vld [vmem:[%s301 + $0x28] sm:$0xf]
        %v566 = vld [vmem:[%s301 + $0x2c] sm:$0xf]
        %v567 = vld [vmem:[%s301 + $0x30] sm:$0xf]
        %v568 = vld [vmem:[%s301 + $0x34] sm:$0xf]
        %v569 = vld [vmem:[%s301 + $0x38] sm:$0xf]
        %v570 = vld [vmem:[%s301 + $0x3c] sm:$0xf]
        %v571 = vpack.c.bf16 %v502, %v500
        %v572 = vpack.c.bf16 %v507, %v505
        %v573 = vpack.c.bf16 %v512, %v510
        %v574 = vpack.c.bf16 %v517, %v515
        %v575 = vpack.c.bf16 %v522, %v520
        %v576 = vpack.c.bf16 %v527, %v525
        %v577 = vpack.c.bf16 %v532, %v530
        %v578 = vpack.c.bf16 %v537, %v535
        %v595 = vunpack.c.l.b16 %v555
        %v596 = vunpack.c.l.b16 %v556
        %v597 = vunpack.c.l.b16 %v557
        %v598 = vunpack.c.l.b16 %v558
        %v599 = vunpack.c.l.b16 %v559
        %v600 = vunpack.c.l.b16 %v560
        %v601 = vunpack.c.l.b16 %v561
        %v602 = vunpack.c.l.b16 %v562
        %v603 = vunpack.c.l.b16 %v563
        %v604 = vunpack.c.l.b16 %v564
        %v605 = vunpack.c.l.b16 %v565
        %v606 = vunpack.c.l.b16 %v566
        %v607 = vunpack.c.l.b16 %v567
        %v608 = vunpack.c.l.b16 %v568
        %v609 = vunpack.c.l.b16 %v569
        %v610 = vunpack.c.l.b16 %v570
        %v611 = vpack.c.b16 %v596, %v595
        %v612 = vpack.c.b16 %v598, %v597
        %v613 = vpack.c.b16 %v600, %v599
        %v614 = vpack.c.b16 %v602, %v601
        %v615 = vpack.c.b16 %v604, %v603
        %v616 = vpack.c.b16 %v606, %v605
        %v617 = vpack.c.b16 %v608, %v607
        %v618 = vpack.c.b16 %v610, %v609
        %627 = vmatpush.bf16.msra.mxu0 %v578
        %628 = vmatpush.bf16.msra.mxu0 %v577
        %629 = vmatpush.bf16.msra.mxu0 %v576
        %630 = vmatpush.bf16.msra.mxu0 %v575
        %631 = vmatpush.bf16.msra.mxu0 %v574
        %632 = vmatpush.bf16.msra.mxu0 %v573
        %633 = vmatpush.bf16.msra.mxu0 %v572
        %634 = vmatpush.bf16.msra.mxu0 %v571
        %635 = vmatmul.bf16.gmra.mxu0 %v611
        %v636 = vpop.f32.mrf.mxu0
        %v637 = vadd.f32 0.0, %v636
        %v638 = vpop.f32.mrf.mxu0
        %v639 = vadd.f32 0.0, %v638
        %640 = vmatmul.bf16.gmra.mxu0 %v612
        %v641 = vpop.f32.mrf.mxu0
        %v642 = vadd.f32 0.0, %v641
        %v643 = vpop.f32.mrf.mxu0
        %v644 = vadd.f32 0.0, %v643
        %645 = vmatmul.bf16.gmra.mxu0 %v613
        %v646 = vpop.f32.mrf.mxu0
        %v647 = vadd.f32 0.0, %v646
        %v648 = vpop.f32.mrf.mxu0
        %v649 = vadd.f32 0.0, %v648
        %650 = vmatmul.bf16.gmra.mxu0 %v614
        %v651 = vpop.f32.mrf.mxu0
        %v652 = vadd.f32 0.0, %v651
        %v653 = vpop.f32.mrf.mxu0
        %v654 = vadd.f32 0.0, %v653
        %655 = vmatmul.bf16.gmra.mxu0 %v615
        %v656 = vpop.f32.mrf.mxu0
        %v657 = vadd.f32 0.0, %v656
        %v658 = vpop.f32.mrf.mxu0
        %v659 = vadd.f32 0.0, %v658
        %660 = vmatmul.bf16.gmra.mxu0 %v616
        %v661 = vpop.f32.mrf.mxu0
        %v662 = vadd.f32 0.0, %v661
        %v663 = vpop.f32.mrf.mxu0
        %v664 = vadd.f32 0.0, %v663
        %665 = vmatmul.bf16.gmra.mxu0 %v617
        %v666 = vpop.f32.mrf.mxu0
        %v667 = vadd.f32 0.0, %v666
        %v668 = vpop.f32.mrf.mxu0
        %v669 = vadd.f32 0.0, %v668
        %670 = vmatmul.bf16.gmra.mxu0 %v618
        %v671 = vpop.f32.mrf.mxu0
        %v672 = vadd.f32 0.0, %v671
        %v673 = vpop.f32.mrf.mxu0
        %v674 = vadd.f32 0.0, %v673
        %675 = vdwg.mxu0
        %v676 = vadd.f32 %v539, %v637
        %v677 = vadd.f32 %v540, %v639
        %v678 = vadd.f32 %v541, %v642
        %v679 = vadd.f32 %v542, %v644
        %v680 = vadd.f32 %v543, %v647
        %v681 = vadd.f32 %v544, %v649
        %v682 = vadd.f32 %v545, %v652
        %v683 = vadd.f32 %v546, %v654
        %v684 = vadd.f32 %v547, %v657
        %v685 = vadd.f32 %v548, %v659
        %v686 = vadd.f32 %v549, %v662
        %v687 = vadd.f32 %v550, %v664
        %v688 = vadd.f32 %v551, %v667
        %v689 = vadd.f32 %v552, %v669
        %v690 = vadd.f32 %v553, %v672
        %v691 = vadd.f32 %v554, %v674
        %692 = vst [vmem:[#allocation2] sm:$0xff] %v676
        %693 = vst [vmem:[#allocation2 + $0x8] sm:$0xff] %v677
        %694 = vst [vmem:[#allocation2 + $0x10] sm:$0xff] %v678
        %695 = vst [vmem:[#allocation2 + $0x18] sm:$0xff] %v679
        %696 = vst [vmem:[#allocation2 + $0x20] sm:$0xff] %v680
        %697 = vst [vmem:[#allocation2 + $0x28] sm:$0xff] %v681
        %698 = vst [vmem:[#allocation2 + $0x30] sm:$0xff] %v682
        %699 = vst [vmem:[#allocation2 + $0x38] sm:$0xff] %v683
        %700 = vst [vmem:[#allocation2 + $0x40] sm:$0xff] %v684
        %701 = vst [vmem:[#allocation2 + $0x48] sm:$0xff] %v685
        %702 = vst [vmem:[#allocation2 + $0x50] sm:$0xff] %v686
        %703 = vst [vmem:[#allocation2 + $0x58] sm:$0xff] %v687
        %704 = vst [vmem:[#allocation2 + $0x60] sm:$0xff] %v688
        %705 = vst [vmem:[#allocation2 + $0x68] sm:$0xff] %v689
        %706 = vst [vmem:[#allocation2 + $0x70] sm:$0xff] %v690
        %707 = vst [vmem:[#allocation2 + $0x78] sm:$0xff] %v691
        %p708 = scmp.eq.s32.totalorder %s20, 1
        // Predicated region
        $region82: #{_gcn_forward_impl.3} parent=72 // pred_check
          %p709 = pneg %p708
        $region83: #{_gcn_forward_impl.3} parent=72 // pred_check_branch
          %711 = sbr.rel (%p709) target = $region85
        $region84: #{_gcn_forward_impl.3} parent=72 // pred_region
          %v712 = vld [vmem:[#allocation2] sm:$0xff]
          %v713 = vld [vmem:[#allocation2 + $0x8] sm:$0xff]
          %v714 = vld [vmem:[#allocation2 + $0x10] sm:$0xff]
          %v715 = vld [vmem:[#allocation2 + $0x18] sm:$0xff]
          %v716 = vld [vmem:[#allocation2 + $0x20] sm:$0xff]
          %v717 = vld [vmem:[#allocation2 + $0x28] sm:$0xff]
          %v718 = vld [vmem:[#allocation2 + $0x30] sm:$0xff]
          %v719 = vld [vmem:[#allocation2 + $0x38] sm:$0xff]
          %v720 = vld [vmem:[#allocation2 + $0x40] sm:$0xff]
          %v721 = vld [vmem:[#allocation2 + $0x48] sm:$0xff]
          %v722 = vld [vmem:[#allocation2 + $0x50] sm:$0xff]
          %v723 = vld [vmem:[#allocation2 + $0x58] sm:$0xff]
          %v724 = vld [vmem:[#allocation2 + $0x60] sm:$0xff]
          %v725 = vld [vmem:[#allocation2 + $0x68] sm:$0xff]
          %v726 = vld [vmem:[#allocation2 + $0x70] sm:$0xff]
          %v727 = vld [vmem:[#allocation2 + $0x78] sm:$0xff]
          %v728 = vld [vmem:[%s3] sm:$0x1]
          %v730 = vperm.slane %v728, 0
          %v732 = vadd.f32 %v712, %v730
          %v733 = vadd.f32 %v713, %v730
          %v734 = vadd.f32 %v714, %v730
          %v735 = vadd.f32 %v715, %v730
          %v736 = vadd.f32 %v716, %v730
          %v737 = vadd.f32 %v717, %v730
          %v738 = vadd.f32 %v718, %v730
          %v739 = vadd.f32 %v719, %v730
          %v740 = vadd.f32 %v720, %v730
          %v741 = vadd.f32 %v721, %v730
          %v742 = vadd.f32 %v722, %v730
          %v743 = vadd.f32 %v723, %v730
          %v744 = vadd.f32 %v724, %v730
          %v745 = vadd.f32 %v725, %v730
          %v746 = vadd.f32 %v726, %v730
          %v747 = vadd.f32 %v727, %v730
          %v748 = vmax.f32 %v732, 0.0
          %v749 = vmax.f32 %v733, 0.0
          %v750 = vmax.f32 %v734, 0.0
          %v751 = vmax.f32 %v735, 0.0
          %v752 = vmax.f32 %v736, 0.0
          %v753 = vmax.f32 %v737, 0.0
          %v754 = vmax.f32 %v738, 0.0
          %v755 = vmax.f32 %v739, 0.0
          %v756 = vmax.f32 %v740, 0.0
          %v757 = vmax.f32 %v741, 0.0
          %v758 = vmax.f32 %v742, 0.0
          %v759 = vmax.f32 %v743, 0.0
          %v760 = vmax.f32 %v744, 0.0
          %v761 = vmax.f32 %v745, 0.0
          %v762 = vmax.f32 %v746, 0.0
          %v763 = vmax.f32 %v747, 0.0
          %v764 = vpack.c.bf16 %v748, %v748
          %v765 = vpack.c.bf16 %v749, %v749
          %v766 = vpack.c.bf16 %v750, %v750
          %v767 = vpack.c.bf16 %v751, %v751
          %v768 = vpack.c.bf16 %v752, %v752
          %v769 = vpack.c.bf16 %v753, %v753
          %v770 = vpack.c.bf16 %v754, %v754
          %v771 = vpack.c.bf16 %v755, %v755
          %v772 = vpack.c.bf16 %v756, %v756
          %v773 = vpack.c.bf16 %v757, %v757
          %v774 = vpack.c.bf16 %v758, %v758
          %v775 = vpack.c.bf16 %v759, %v759
          %v776 = vpack.c.bf16 %v760, %v760
          %v777 = vpack.c.bf16 %v761, %v761
          %v778 = vpack.c.bf16 %v762, %v762
          %v779 = vpack.c.bf16 %v763, %v763
          %780 = vst [vmem:[%s340] sm:$0xf] %v764
          %781 = vst [vmem:[%s340 + $0x4] sm:$0xf] %v765
          %782 = vst [vmem:[%s340 + $0x8] sm:$0xf] %v766
          %783 = vst [vmem:[%s340 + $0xc] sm:$0xf] %v767
          %784 = vst [vmem:[%s340 + $0x10] sm:$0xf] %v768
          %785 = vst [vmem:[%s340 + $0x14] sm:$0xf] %v769
          %786 = vst [vmem:[%s340 + $0x18] sm:$0xf] %v770
          %787 = vst [vmem:[%s340 + $0x1c] sm:$0xf] %v771
          %788 = vst [vmem:[%s340 + $0x20] sm:$0xf] %v772
          %789 = vst [vmem:[%s340 + $0x24] sm:$0xf] %v773
          %790 = vst [vmem:[%s340 + $0x28] sm:$0xf] %v774
          %791 = vst [vmem:[%s340 + $0x2c] sm:$0xf] %v775
          %792 = vst [vmem:[%s340 + $0x30] sm:$0xf] %v776
          %793 = vst [vmem:[%s340 + $0x34] sm:$0xf] %v777
          %794 = vst [vmem:[%s340 + $0x38] sm:$0xf] %v778
          %795 = vst [vmem:[%s340 + $0x3c] sm:$0xf] %v779
        $region85: #{_gcn_forward_impl.3} parent=72 // pred_fallthru
          _
        %s796 = smul.u32 16, %s19
        %p797 = scmp.lt.s32.totalorder %s796, 31
        %s798 = scalar_select %p797, %s796, 31
        %s799 = smul.addr %s798, 4
        %s800 = scalar_lea.vmem %s4, %s799
        // Predicated region
        $region86: #{_gcn_forward_impl.3} parent=72 // pred_check
          %p801 = pneg %p141
        $region87: #{_gcn_forward_impl.3} parent=72 // pred_check_branch
          %803 = sbr.rel (%p801) target = $region89
        $region88: #{_gcn_forward_impl.3} parent=72 // pred_region
          %s804 = smul.u32 16, %s19
        $region89: #{_gcn_forward_impl.3} parent=72 // pred_fallthru
          _
      $region73: #{_gcn_forward_impl.3} parent=5 // pred_fallthru
        _
      %p805 = scmp.le.s32.totalorder 2, %s10
      // Predicated region
      $region90: #{_gcn_forward_impl.3} parent=5 // pred_check
        %p806 = pneg %p805
      $region91: #{_gcn_forward_impl.3} parent=5 // pred_check_branch
        %808 = sbr.rel (%p806) target = $region93
      $region92: #{_gcn_forward_impl.3} parent=5 // pred_region
        %s809 = ssub.s32 %s10, 2
        // Predicated region
        $region94: #{_gcn_forward_impl.3} parent=92 // pred_check
          %p810 = pneg %p147
        $region95: #{_gcn_forward_impl.3} parent=92 // pred_check_branch
          %812 = sbr.rel (%p810) target = $region97
        $region96: #{_gcn_forward_impl.3} parent=92 // pred_region
          %s813 = smul.u32 16, %s21
          %p814 = scmp.lt.s32.totalorder %s813, 31
          %s815 = scalar_select %p814, %s813, 31
          %s816 = smul.addr %s815, 4
          %s817 = scalar_lea.vmem %s4, %s816
        $region97: #{_gcn_forward_impl.3} parent=92 // pred_fallthru
          _
      $region93: #{_gcn_forward_impl.3} parent=5 // pred_fallthru
        _
    $region6: #{_gcn_forward_impl.3} parent=1 // loop_footer
      %s14 = sadd.s32 1, %s10
    $region7: #{_gcn_forward_impl.3} parent=1 // loop_footer_branch
      %9 = sbr.rel target = $region3
    $region8: #{_gcn_forward_impl.3} parent=1 // loop_exit
      _

</llo_original>
